<compile_context>
chip_gen: v7x
topology: tpu7x:2x2x1
jax: 0.10.0
libtpu: 0.0.40
codegen_flags: <defaults>
</compile_context>

<pallas_src>
import functools

import jax
import jax.numpy as jnp
from jax.experimental import pallas as pl
from jax.experimental.pallas import tpu as pltpu


# ----------------------------------------------------------------------------
# Fused per-graph forward kernel (grid over graphs; everything lives in VMEM)
# ----------------------------------------------------------------------------
def _l2_normalize(x):
    # F.normalize(p=2, dim=1): per-node L2 normalization (rsqrt -> EUP).
    return x * jax.lax.rsqrt(jnp.maximum(jnp.sum(x * x, axis=1, keepdims=True), 1e-12))


def _fused_diffpool_kernel(h_ref, a_ref, w_ref, pred_ref, hp_ref, yp_ref,
                           *, layouts, hidden_dim, assign_num):
    f32 = jnp.float32
    bf16 = jnp.bfloat16

    # Adjacency of the current graph: bf16 0/1 fed to the MXU (exact), f32 for deg.
    a_mxu = a_ref[0]                                    # (Ng, Ng) bf16
    deg = jnp.sum(a_mxu.astype(f32), axis=1, keepdims=True)
    inv_deg = pl.reciprocal(jnp.maximum(deg, 1.0), approx=True)

    def wslice(name):
        off, rows, cols = layouts[name]                 # static Python ints
        return w_ref[off:off + rows, :cols]

    def sage(x, name):
        """GraphSAGE(meanpool) pass; returns the pre-normalization node-apply output."""
        din = x.shape[1]
        wp_pack = wslice(name + "_p")                   # (din+1, dagg) = [Wp ; bp]
        wp, bp = wp_pack[:din, :], wp_pack[din:, :]
        # meanpool aggregator: mean_{j in N(i)} relu(h_j @ Wp + bp)
        m = jnp.maximum(jnp.dot(x, wp, preferred_element_type=f32) + bp, 0.0)
        pooled = jnp.dot(a_mxu, m.astype(bf16), preferred_element_type=f32) * inv_deg
        # node-apply: single matmul on [self | pooled] against packed [Ws ; Wn ; b]
        xc = jnp.concatenate([x, pooled], axis=1)       # (Ng, din + dagg)
        kdim = xc.shape[1]
        wn_pack = wslice(name + "_n")                   # (kdim+1, dout)
        w, b = wn_pack[:kdim, :], wn_pack[kdim:, :]
        return jnp.dot(xc, w, preferred_element_type=f32) + b

    # ---- gc_before_pool: 3x GraphSAGE(meanpool) -----------------------------
    h = h_ref[0].astype(f32)                            # (Ng, in_dim)
    h = jnp.maximum(_l2_normalize(sage(h, "gc1")), 0.0)
    h = jnp.maximum(_l2_normalize(sage(h, "gc2")), 0.0)
    g_emb = _l2_normalize(sage(h, "gc3"))               # last layer: no activation

    # ---- first_diffpool_layer: feat_gc + pool_gc fused into one SAGE pass ---
    fp = sage(g_emb, "fp")                              # (Ng, hidden + assign)
    feat = jnp.maximum(_l2_normalize(fp[:, :hidden_dim]), 0.0)
    logits = jnp.maximum(_l2_normalize(fp[:, hidden_dim:hidden_dim + assign_num]), 0.0)

    # per-node softmax over this graph's assign_num clusters (exact reciprocal)
    e = jnp.exp(logits - jnp.max(logits, axis=1, keepdims=True))
    s = e * pl.reciprocal(jnp.sum(e, axis=1, keepdims=True), approx=False)   # (Ng, K)

    # h_pool = S^T @ feat (contract over nodes) -> (K, H)
    hp = jax.lax.dot_general(s, feat, (((0,), (0,)), ((), ())),
                             preferred_element_type=f32)

    # lane-dense flatten: readout row = [hp[0,:] | hp[1,:] | ...]  -> (1, K*H)
    readout = jnp.concatenate([hp[k:k + 1, :] for k in range(assign_num)], axis=1)
    hp_ref[...] = readout.reshape(hp_ref.shape).astype(hp_ref.dtype)

    # fused pred Linear: ypred = readout @ W_pred + b_pred
    kh = assign_num * hidden_dim
    pred = pred_ref[...]                                # (K*H + 1, label_dim)
    yp = jnp.dot(readout, pred[:kh, :], preferred_element_type=f32) + pred[kh:, :]
    yp_ref[...] = yp.reshape(yp_ref.shape).astype(yp_ref.dtype)
    # TODO(synk): adj_pool = S^T A S (link-pred / further pooling) is unused in the
    # returned (ypred, readout) when num_pool == 1 and linkpred=False, so skipped.


# ----------------------------------------------------------------------------
# Weight packing (done once in the wrapper, plain JAX)
# ----------------------------------------------------------------------------
def _pack_sage(p):
    """Pack one SAGE layer into [Wp ; bp] and [Ws ; Wn ; b] (one matmul per stage)."""
    wp_pack = jnp.concatenate([p["wp"], p["bp"]], axis=0)            # (din+1, dagg)
    wn_pack = jnp.concatenate([p["ws"], p["wn"], p["b"]], axis=0)    # (2*din+1, dout)
    return wp_pack, wn_pack


def _pack_feat_pool(pf, pp):
    """Fuse feat_gc and pool_gc into a single SAGE pass (outputs concatenated on lanes)."""
    din = pf["ws"].shape[0]
    df, dp = pf["ws"].shape[1], pp["ws"].shape[1]
    wp_pack = jnp.concatenate(
        [jnp.concatenate([pf["wp"], pp["wp"]], axis=1),
         jnp.concatenate([pf["bp"], pp["bp"]], axis=1)], axis=0)     # (din+1, 2*din)
    wn_pack = jnp.concatenate(
        [jnp.concatenate([pf["ws"], pp["ws"]], axis=1),                           # self
         jnp.concatenate([pf["wn"], jnp.zeros((din, dp), jnp.float32)], axis=1),  # nbr-feat
         jnp.concatenate([jnp.zeros((din, df), jnp.float32), pp["wn"]], axis=1),  # nbr-pool
         jnp.concatenate([pf["b"], pp["b"]], axis=1)], axis=0)       # (3*din+1, df+dp)
    return wp_pack, wn_pack


def _pack_all_weights(params):
    """Collapse all 8 packed weight blocks into one lane-padded VMEM buffer."""
    named = []
    for name in ("gc1", "gc2", "gc3"):
        wp, wn = _pack_sage(params[name])
        named += [(name + "_p", wp), (name + "_n", wn)]
    wfp, wfn = _pack_feat_pool(params["feat_gc"], params["pool_gc"])
    named += [("fp_p", wfp), ("fp_n", wfn)]

    max_cols = max(int(a.shape[1]) for _, a in named)
    layouts, pieces, row = {}, [], 0
    for name, a in named:
        r, c = int(a.shape[0]), int(a.shape[1])
        layouts[name] = (row, r, c)                     # static sublane offset / extent
        r_pad = -(-r // 8) * 8                          # 8-align each block's offset
        pieces.append(jnp.pad(a, ((0, r_pad - r), (0, max_cols - c))))
        row += r_pad
    return jnp.concatenate(pieces, axis=0), layouts


# ----------------------------------------------------------------------------
# Full forward: one fused pallas_call (readout + ypred both produced in-kernel)
# ----------------------------------------------------------------------------
def diffpool_forward(h, adj, params):
    B, Ng, in_dim = h.shape
    hidden = params["feat_gc"]["ws"].shape[1]
    assign = params["pool_gc"]["ws"].shape[1]
    label_dim = params["pred_w"].shape[1]
    kh = assign * hidden

    w_all, layouts = _pack_all_weights(params)
    pred_pack = jnp.concatenate([params["pred_w"], params["pred_b"]], axis=0)
    adj_bf16 = adj.astype(jnp.bfloat16)                 # exact for 0/1 A; halves DMA bytes

    kernel = functools.partial(
        _fused_diffpool_kernel, layouts=layouts,
        hidden_dim=hidden, assign_num=assign)

    hp_out, yp_out = pl.pallas_call(
        kernel,
        out_shape=(jax.ShapeDtypeStruct((B, 1, kh), jnp.float32),
                   jax.ShapeDtypeStruct((B, 1, label_dim), jnp.float32)),
        grid=(B,),
        in_specs=[
            pl.BlockSpec((1, Ng, in_dim), lambda b: (b, 0, 0)),   # node features
            pl.BlockSpec((1, Ng, Ng), lambda b: (b, 0, 0)),       # adjacency (bf16)
            pl.BlockSpec(w_all.shape, lambda b: (0, 0)),          # packed SAGE weights
            pl.BlockSpec(pred_pack.shape, lambda b: (0, 0)),      # packed pred Linear
        ],
        out_specs=(
            pl.BlockSpec((1, 1, kh), lambda b: (b, 0, 0)),        # lane-dense readout
            pl.BlockSpec((1, 1, label_dim), lambda b: (b, 0, 0)),
        ),
        compiler_params=pltpu.CompilerParams(
            dimension_semantics=("parallel",),          # shard graphs across TCs (v7x)
            vmem_limit_bytes=32 * 1024 * 1024),
    )(h, adj_bf16, w_all, pred_pack)

    readout = hp_out.reshape(B, kh)                     # bitcast (drop unit axis)
    ypred = yp_out.reshape(B, label_dim)
    return ypred, readout


# ----------------------------------------------------------------------------
# Deterministic parameter init (xavier_uniform, gain=sqrt(2); biases = 0)
# ----------------------------------------------------------------------------
def _xavier(key, shape, gain=2.0 ** 0.5):
    fan_in, fan_out = shape
    limit = gain * (6.0 / (fan_in + fan_out)) ** 0.5
    return jax.random.uniform(key, shape, jnp.float32, -limit, limit)


def make_sage_params(key, din, dout):
    k1, k2, k3 = jax.random.split(key, 3)
    return {
        "wp": _xavier(k1, (din, din)),            # meanpool aggregator linear
        "bp": jnp.zeros((1, din), jnp.float32),
        "ws": _xavier(k2, (din, dout)),           # node-apply linear, self part
        "wn": _xavier(k3, (din, dout)),           # node-apply linear, neighbor part
        "b": jnp.zeros((1, dout), jnp.float32),
    }


if __name__ == "__main__":
    # hyperparameters
    B, Ng = 2, 16
    in_dim, hidden_dim, embedding_dim = 16, 32, 32
    assign_num = 8
    label_dim = 10

    key = jax.random.PRNGKey(0)
    k_feat, k_adj, k_p1, k_p2, k_p3, k_pf, k_pa, k_pred = jax.random.split(key, 8)

    # inputs: node features + dense symmetric 0/1 adjacency with self loops
    h = jax.random.normal(k_feat, (B, Ng, in_dim), jnp.float32)
    a_rand = (jax.random.uniform(k_adj, (B, Ng, Ng)) < 0.3).astype(jnp.float32)
    adj = jnp.clip(a_rand + jnp.transpose(a_rand, (0, 2, 1))
                   + jnp.eye(Ng, dtype=jnp.float32)[None], 0.0, 1.0)

    params = {
        "gc1": make_sage_params(k_p1, in_dim, hidden_dim),
        "gc2": make_sage_params(k_p2, hidden_dim, hidden_dim),
        "gc3": make_sage_params(k_p3, hidden_dim, embedding_dim),
        "feat_gc": make_sage_params(k_pf, embedding_dim, hidden_dim),
        "pool_gc": make_sage_params(k_pa, embedding_dim, assign_num),
        "pred_w": _xavier(k_pred, (assign_num * hidden_dim, label_dim)),
        "pred_b": jnp.zeros((1, label_dim), jnp.float32),
    }

    fwd = jax.jit(diffpool_forward)
    ypred, readout = fwd(h, adj, params)
    jax.block_until_ready((ypred, readout))

    assert ypred.shape == (B, label_dim)
    assert readout.shape == (B, assign_num * hidden_dim)
    print("KERNEL_OK")
</pallas_src>

<mosaic_0001>
module attributes {stable_mosaic.version = 11 : i64} {
  func.func @_fused_diffpool_kernel(%arg0: i32, %arg1: memref<1x16x16xf32, #tpu.memory_space<vmem>>, %arg2: memref<1x16x16xbf16, #tpu.memory_space<vmem>>, %arg3: memref<432x64xf32, #tpu.memory_space<vmem>>, %arg4: memref<257x10xf32, #tpu.memory_space<vmem>>, %arg5: memref<1x1x256xf32, #tpu.memory_space<vmem>>, %arg6: memref<1x1x10xf32, #tpu.memory_space<vmem>>) attributes {dimension_semantics = [#tpu.dimension_semantics<parallel>], iteration_bounds = array<i64: 2>, scalar_prefetch = 0 : i64, scratch_operands = 0 : i64, tpu.core_type = #tpu.core_type<tc>, window_params = [{transform_indices = @transform_0, window_bounds = array<i64: 1, 16, 16>}, {transform_indices = @transform_1, window_bounds = array<i64: 1, 16, 16>}, {pipeline_mode = #tpu.pipeline_mode<synchronous>, transform_indices = @transform_2, window_bounds = array<i64: 432, 64>}, {pipeline_mode = #tpu.pipeline_mode<synchronous>, transform_indices = @transform_3, window_bounds = array<i64: 257, 10>}, {transform_indices = @transform_4, window_bounds = array<i64: 1, 1, 256>}, {transform_indices = @transform_5, window_bounds = array<i64: 1, 1, 10>}]} {
    %c0 = arith.constant 0 : index
    %c0_0 = arith.constant 0 : index
    %c0_1 = arith.constant 0 : index
    %0 = vector.load %arg2[%c0, %c0_0, %c0_1] : memref<1x16x16xbf16, #tpu.memory_space<vmem>>, vector<1x16x16xbf16>
    %1 = vector.shape_cast %0 : vector<1x16x16xbf16> to vector<16x16xbf16>
    %2 = arith.extf %1 : vector<16x16xbf16> to vector<16x16xf32>
    %cst = arith.constant dense<0.000000e+00> : vector<16xf32>
    %3 = vector.multi_reduction <add>, %2, %cst [1] : vector<16x16xf32> to vector<16xf32>
    %4 = vector.shape_cast %3 : vector<16xf32> to vector<16x1xf32>
    %cst_2 = arith.constant 1.000000e+00 : f32
    %5 = vector.broadcast %cst_2 : f32 to vector<16x1xf32>
    %6 = arith.maximumf %4, %5 : vector<16x1xf32>
    %7 = tpu.reciprocal %6 {approx = true} : vector<16x1xf32> -> vector<16x1xf32>
    %c0_3 = arith.constant 0 : index
    %c0_4 = arith.constant 0 : index
    %c0_5 = arith.constant 0 : index
    %8 = vector.load %arg1[%c0_3, %c0_4, %c0_5] : memref<1x16x16xf32, #tpu.memory_space<vmem>>, vector<1x16x16xf32>
    %9 = vector.shape_cast %8 : vector<1x16x16xf32> to vector<16x16xf32>
    %c0_6 = arith.constant 0 : index
    %c0_7 = arith.constant 0 : index
    %10 = vector.load %arg3[%c0_6, %c0_7] : memref<432x64xf32, #tpu.memory_space<vmem>>, vector<17x16xf32>
    %11 = vector.extract_strided_slice %10 {offsets = [0, 0], sizes = [16, 16], strides = [1, 1]} : vector<17x16xf32> to vector<16x16xf32>
    %12 = vector.extract_strided_slice %10 {offsets = [16, 0], sizes = [1, 16], strides = [1, 1]} : vector<17x16xf32> to vector<1x16xf32>
    %cst_8 = arith.constant dense<0.000000e+00> : vector<16x16xf32>
    %13 = tpu.matmul %9, %11, %cst_8 {dimension_numbers = #tpu.dot_dimension_numbers<[1], [0], [0], [1], [0, 0, 1, 1], [], []>} : vector<16x16xf32>, vector<16x16xf32>, vector<16x16xf32> -> vector<16x16xf32>
    %14 = vector.broadcast %12 : vector<1x16xf32> to vector<16x16xf32>
    %15 = arith.addf %13, %14 : vector<16x16xf32>
    %cst_9 = arith.constant 0.000000e+00 : f32
    %16 = vector.broadcast %cst_9 : f32 to vector<16x16xf32>
    %17 = arith.maximumf %15, %16 : vector<16x16xf32>
    %18 = arith.truncf %17 : vector<16x16xf32> to vector<16x16xbf16>
    %cst_10 = arith.constant dense<0.000000e+00> : vector<16x16xf32>
    %19 = tpu.matmul %1, %18, %cst_10 {dimension_numbers = #tpu.dot_dimension_numbers<[1], [0], [0], [1], [0, 0, 1, 1], [], []>} : vector<16x16xbf16>, vector<16x16xbf16>, vector<16x16xf32> -> vector<16x16xf32>
    %20 = vector.broadcast %7 : vector<16x1xf32> to vector<16x16xf32>
    %21 = arith.mulf %19, %20 : vector<16x16xf32>
    %22 = tpu.concatenate %9, %21 in 1 : vector<16x16xf32>, vector<16x16xf32> -> vector<16x32xf32>
    %c24 = arith.constant 24 : index
    %c0_11 = arith.constant 0 : index
    %23 = vector.load %arg3[%c24, %c0_11] : memref<432x64xf32, #tpu.memory_space<vmem>>, vector<33x32xf32>
    %24 = vector.extract_strided_slice %23 {offsets = [0, 0], sizes = [32, 32], strides = [1, 1]} : vector<33x32xf32> to vector<32x32xf32>
    %25 = vector.extract_strided_slice %23 {offsets = [32, 0], sizes = [1, 32], strides = [1, 1]} : vector<33x32xf32> to vector<1x32xf32>
    %cst_12 = arith.constant dense<0.000000e+00> : vector<16x32xf32>
    %26 = tpu.matmul %22, %24, %cst_12 {dimension_numbers = #tpu.dot_dimension_numbers<[1], [0], [0], [1], [0, 0, 1, 1], [], []>} : vector<16x32xf32>, vector<32x32xf32>, vector<16x32xf32> -> vector<16x32xf32>
    %27 = vector.broadcast %25 : vector<1x32xf32> to vector<16x32xf32>
    %28 = arith.addf %26, %27 : vector<16x32xf32>
    %29 = arith.mulf %28, %28 : vector<16x32xf32>
    %cst_13 = arith.constant dense<0.000000e+00> : vector<16xf32>
    %30 = vector.multi_reduction <add>, %29, %cst_13 [1] : vector<16x32xf32> to vector<16xf32>
    %31 = vector.shape_cast %30 : vector<16xf32> to vector<16x1xf32>
    %cst_14 = arith.constant 9.99999996E-13 : f32
    %32 = vector.broadcast %cst_14 : f32 to vector<16x1xf32>
    %33 = arith.maximumf %31, %32 : vector<16x1xf32>
    %34 = math.rsqrt %33 : vector<16x1xf32>
    %35 = vector.broadcast %34 : vector<16x1xf32> to vector<16x32xf32>
    %36 = arith.mulf %28, %35 : vector<16x32xf32>
    %cst_15 = arith.constant 0.000000e+00 : f32
    %37 = vector.broadcast %cst_15 : f32 to vector<16x32xf32>
    %38 = arith.maximumf %36, %37 : vector<16x32xf32>
    %c64 = arith.constant 64 : index
    %c0_16 = arith.constant 0 : index
    %39 = vector.load %arg3[%c64, %c0_16] : memref<432x64xf32, #tpu.memory_space<vmem>>, vector<33x32xf32>
    %40 = vector.extract_strided_slice %39 {offsets = [0, 0], sizes = [32, 32], strides = [1, 1]} : vector<33x32xf32> to vector<32x32xf32>
    %41 = vector.extract_strided_slice %39 {offsets = [32, 0], sizes = [1, 32], strides = [1, 1]} : vector<33x32xf32> to vector<1x32xf32>
    %cst_17 = arith.constant dense<0.000000e+00> : vector<16x32xf32>
    %42 = tpu.matmul %38, %40, %cst_17 {dimension_numbers = #tpu.dot_dimension_numbers<[1], [0], [0], [1], [0, 0, 1, 1], [], []>} : vector<16x32xf32>, vector<32x32xf32>, vector<16x32xf32> -> vector<16x32xf32>
    %43 = vector.broadcast %41 : vector<1x32xf32> to vector<16x32xf32>
    %44 = arith.addf %42, %43 : vector<16x32xf32>
    %cst_18 = arith.constant 0.000000e+00 : f32
    %45 = vector.broadcast %cst_18 : f32 to vector<16x32xf32>
    %46 = arith.maximumf %44, %45 : vector<16x32xf32>
    %47 = arith.truncf %46 : vector<16x32xf32> to vector<16x32xbf16>
    %cst_19 = arith.constant dense<0.000000e+00> : vector<16x32xf32>
    %48 = tpu.matmul %1, %47, %cst_19 {dimension_numbers = #tpu.dot_dimension_numbers<[1], [0], [0], [1], [0, 0, 1, 1], [], []>} : vector<16x16xbf16>, vector<16x32xbf16>, vector<16x32xf32> -> vector<16x32xf32>
    %49 = vector.broadcast %7 : vector<16x1xf32> to vector<16x32xf32>
    %50 = arith.mulf %48, %49 : vector<16x32xf32>
    %51 = tpu.concatenate %38, %50 in 1 : vector<16x32xf32>, vector<16x32xf32> -> vector<16x64xf32>
    %c104 = arith.constant 104 : index
    %c0_20 = arith.constant 0 : index
    %52 = vector.load %arg3[%c104, %c0_20] : memref<432x64xf32, #tpu.memory_space<vmem>>, vector<65x32xf32>
    %53 = vector.extract_strided_slice %52 {offsets = [0, 0], sizes = [64, 32], strides = [1, 1]} : vector<65x32xf32> to vector<64x32xf32>
    %54 = vector.extract_strided_slice %52 {offsets = [64, 0], sizes = [1, 32], strides = [1, 1]} : vector<65x32xf32> to vector<1x32xf32>
    %cst_21 = arith.constant dense<0.000000e+00> : vector<16x32xf32>
    %55 = tpu.matmul %51, %53, %cst_21 {dimension_numbers = #tpu.dot_dimension_numbers<[1], [0], [0], [1], [0, 0, 1, 1], [], []>} : vector<16x64xf32>, vector<64x32xf32>, vector<16x32xf32> -> vector<16x32xf32>
    %56 = vector.broadcast %54 : vector<1x32xf32> to vector<16x32xf32>
    %57 = arith.addf %55, %56 : vector<16x32xf32>
    %58 = arith.mulf %57, %57 : vector<16x32xf32>
    %cst_22 = arith.constant dense<0.000000e+00> : vector<16xf32>
    %59 = vector.multi_reduction <add>, %58, %cst_22 [1] : vector<16x32xf32> to vector<16xf32>
    %60 = vector.shape_cast %59 : vector<16xf32> to vector<16x1xf32>
    %cst_23 = arith.constant 9.99999996E-13 : f32
    %61 = vector.broadcast %cst_23 : f32 to vector<16x1xf32>
    %62 = arith.maximumf %60, %61 : vector<16x1xf32>
    %63 = math.rsqrt %62 : vector<16x1xf32>
    %64 = vector.broadcast %63 : vector<16x1xf32> to vector<16x32xf32>
    %65 = arith.mulf %57, %64 : vector<16x32xf32>
    %cst_24 = arith.constant 0.000000e+00 : f32
    %66 = vector.broadcast %cst_24 : f32 to vector<16x32xf32>
    %67 = arith.maximumf %65, %66 : vector<16x32xf32>
    %c176 = arith.constant 176 : index
    %c0_25 = arith.constant 0 : index
    %68 = vector.load %arg3[%c176, %c0_25] : memref<432x64xf32, #tpu.memory_space<vmem>>, vector<33x32xf32>
    %69 = vector.extract_strided_slice %68 {offsets = [0, 0], sizes = [32, 32], strides = [1, 1]} : vector<33x32xf32> to vector<32x32xf32>
    %70 = vector.extract_strided_slice %68 {offsets = [32, 0], sizes = [1, 32], strides = [1, 1]} : vector<33x32xf32> to vector<1x32xf32>
    %cst_26 = arith.constant dense<0.000000e+00> : vector<16x32xf32>
    %71 = tpu.matmul %67, %69, %cst_26 {dimension_numbers = #tpu.dot_dimension_numbers<[1], [0], [0], [1], [0, 0, 1, 1], [], []>} : vector<16x32xf32>, vector<32x32xf32>, vector<16x32xf32> -> vector<16x32xf32>
    %72 = vector.broadcast %70 : vector<1x32xf32> to vector<16x32xf32>
    %73 = arith.addf %71, %72 : vector<16x32xf32>
    %cst_27 = arith.constant 0.000000e+00 : f32
    %74 = vector.broadcast %cst_27 : f32 to vector<16x32xf32>
    %75 = arith.maximumf %73, %74 : vector<16x32xf32>
    %76 = arith.truncf %75 : vector<16x32xf32> to vector<16x32xbf16>
    %cst_28 = arith.constant dense<0.000000e+00> : vector<16x32xf32>
    %77 = tpu.matmul %1, %76, %cst_28 {dimension_numbers = #tpu.dot_dimension_numbers<[1], [0], [0], [1], [0, 0, 1, 1], [], []>} : vector<16x16xbf16>, vector<16x32xbf16>, vector<16x32xf32> -> vector<16x32xf32>
    %78 = vector.broadcast %7 : vector<16x1xf32> to vector<16x32xf32>
    %79 = arith.mulf %77, %78 : vector<16x32xf32>
    %80 = tpu.concatenate %67, %79 in 1 : vector<16x32xf32>, vector<16x32xf32> -> vector<16x64xf32>
    %c216 = arith.constant 216 : index
    %c0_29 = arith.constant 0 : index
    %81 = vector.load %arg3[%c216, %c0_29] : memref<432x64xf32, #tpu.memory_space<vmem>>, vector<65x32xf32>
    %82 = vector.extract_strided_slice %81 {offsets = [0, 0], sizes = [64, 32], strides = [1, 1]} : vector<65x32xf32> to vector<64x32xf32>
    %83 = vector.extract_strided_slice %81 {offsets = [64, 0], sizes = [1, 32], strides = [1, 1]} : vector<65x32xf32> to vector<1x32xf32>
    %cst_30 = arith.constant dense<0.000000e+00> : vector<16x32xf32>
    %84 = tpu.matmul %80, %82, %cst_30 {dimension_numbers = #tpu.dot_dimension_numbers<[1], [0], [0], [1], [0, 0, 1, 1], [], []>} : vector<16x64xf32>, vector<64x32xf32>, vector<16x32xf32> -> vector<16x32xf32>
    %85 = vector.broadcast %83 : vector<1x32xf32> to vector<16x32xf32>
    %86 = arith.addf %84, %85 : vector<16x32xf32>
    %87 = arith.mulf %86, %86 : vector<16x32xf32>
    %cst_31 = arith.constant dense<0.000000e+00> : vector<16xf32>
    %88 = vector.multi_reduction <add>, %87, %cst_31 [1] : vector<16x32xf32> to vector<16xf32>
    %89 = vector.shape_cast %88 : vector<16xf32> to vector<16x1xf32>
    %cst_32 = arith.constant 9.99999996E-13 : f32
    %90 = vector.broadcast %cst_32 : f32 to vector<16x1xf32>
    %91 = arith.maximumf %89, %90 : vector<16x1xf32>
    %92 = math.rsqrt %91 : vector<16x1xf32>
    %93 = vector.broadcast %92 : vector<16x1xf32> to vector<16x32xf32>
    %94 = arith.mulf %86, %93 : vector<16x32xf32>
    %c288 = arith.constant 288 : index
    %c0_33 = arith.constant 0 : index
    %95 = vector.load %arg3[%c288, %c0_33] : memref<432x64xf32, #tpu.memory_space<vmem>>, vector<33x64xf32>
    %96 = vector.extract_strided_slice %95 {offsets = [0, 0], sizes = [32, 64], strides = [1, 1]} : vector<33x64xf32> to vector<32x64xf32>
    %97 = vector.extract_strided_slice %95 {offsets = [32, 0], sizes = [1, 64], strides = [1, 1]} : vector<33x64xf32> to vector<1x64xf32>
    %cst_34 = arith.constant dense<0.000000e+00> : vector<16x64xf32>
    %98 = tpu.matmul %94, %96, %cst_34 {dimension_numbers = #tpu.dot_dimension_numbers<[1], [0], [0], [1], [0, 0, 1, 1], [], []>} : vector<16x32xf32>, vector<32x64xf32>, vector<16x64xf32> -> vector<16x64xf32>
    %99 = vector.broadcast %97 : vector<1x64xf32> to vector<16x64xf32>
    %100 = arith.addf %98, %99 : vector<16x64xf32>
    %cst_35 = arith.constant 0.000000e+00 : f32
    %101 = vector.broadcast %cst_35 : f32 to vector<16x64xf32>
    %102 = arith.maximumf %100, %101 : vector<16x64xf32>
    %103 = arith.truncf %102 : vector<16x64xf32> to vector<16x64xbf16>
    %cst_36 = arith.constant dense<0.000000e+00> : vector<16x64xf32>
    %104 = tpu.matmul %1, %103, %cst_36 {dimension_numbers = #tpu.dot_dimension_numbers<[1], [0], [0], [1], [0, 0, 1, 1], [], []>} : vector<16x16xbf16>, vector<16x64xbf16>, vector<16x64xf32> -> vector<16x64xf32>
    %105 = vector.broadcast %7 : vector<16x1xf32> to vector<16x64xf32>
    %106 = arith.mulf %104, %105 : vector<16x64xf32>
    %107 = tpu.concatenate %94, %106 in 1 : vector<16x32xf32>, vector<16x64xf32> -> vector<16x96xf32>
    %c328 = arith.constant 328 : index
    %c0_37 = arith.constant 0 : index
    %108 = vector.load %arg3[%c328, %c0_37] : memref<432x64xf32, #tpu.memory_space<vmem>>, vector<97x40xf32>
    %109 = vector.extract_strided_slice %108 {offsets = [0, 0], sizes = [96, 40], strides = [1, 1]} : vector<97x40xf32> to vector<96x40xf32>
    %110 = vector.extract_strided_slice %108 {offsets = [96, 0], sizes = [1, 40], strides = [1, 1]} : vector<97x40xf32> to vector<1x40xf32>
    %cst_38 = arith.constant dense<0.000000e+00> : vector<16x40xf32>
    %111 = tpu.matmul %107, %109, %cst_38 {dimension_numbers = #tpu.dot_dimension_numbers<[1], [0], [0], [1], [0, 0, 1, 1], [], []>} : vector<16x96xf32>, vector<96x40xf32>, vector<16x40xf32> -> vector<16x40xf32>
    %112 = vector.broadcast %110 : vector<1x40xf32> to vector<16x40xf32>
    %113 = arith.addf %111, %112 : vector<16x40xf32>
    %114 = vector.extract_strided_slice %113 {offsets = [0, 0], sizes = [16, 32], strides = [1, 1]} : vector<16x40xf32> to vector<16x32xf32>
    %115 = arith.mulf %114, %114 : vector<16x32xf32>
    %cst_39 = arith.constant dense<0.000000e+00> : vector<16xf32>
    %116 = vector.multi_reduction <add>, %115, %cst_39 [1] : vector<16x32xf32> to vector<16xf32>
    %117 = vector.shape_cast %116 : vector<16xf32> to vector<16x1xf32>
    %cst_40 = arith.constant 9.99999996E-13 : f32
    %118 = vector.broadcast %cst_40 : f32 to vector<16x1xf32>
    %119 = arith.maximumf %117, %118 : vector<16x1xf32>
    %120 = math.rsqrt %119 : vector<16x1xf32>
    %121 = vector.broadcast %120 : vector<16x1xf32> to vector<16x32xf32>
    %122 = arith.mulf %114, %121 : vector<16x32xf32>
    %cst_41 = arith.constant 0.000000e+00 : f32
    %123 = vector.broadcast %cst_41 : f32 to vector<16x32xf32>
    %124 = arith.maximumf %122, %123 : vector<16x32xf32>
    %125 = vector.extract_strided_slice %113 {offsets = [0, 32], sizes = [16, 8], strides = [1, 1]} : vector<16x40xf32> to vector<16x8xf32>
    %126 = arith.mulf %125, %125 : vector<16x8xf32>
    %cst_42 = arith.constant dense<0.000000e+00> : vector<16xf32>
    %127 = vector.multi_reduction <add>, %126, %cst_42 [1] : vector<16x8xf32> to vector<16xf32>
    %128 = vector.shape_cast %127 : vector<16xf32> to vector<16x1xf32>
    %cst_43 = arith.constant 9.99999996E-13 : f32
    %129 = vector.broadcast %cst_43 : f32 to vector<16x1xf32>
    %130 = arith.maximumf %128, %129 : vector<16x1xf32>
    %131 = math.rsqrt %130 : vector<16x1xf32>
    %132 = vector.broadcast %131 : vector<16x1xf32> to vector<16x8xf32>
    %133 = arith.mulf %125, %132 : vector<16x8xf32>
    %cst_44 = arith.constant 0.000000e+00 : f32
    %134 = vector.broadcast %cst_44 : f32 to vector<16x8xf32>
    %135 = arith.maximumf %133, %134 : vector<16x8xf32>
    %cst_45 = arith.constant dense<0xFF800000> : vector<16xf32>
    %136 = vector.multi_reduction <maximumf>, %135, %cst_45 [1] : vector<16x8xf32> to vector<16xf32>
    %137 = vector.shape_cast %136 : vector<16xf32> to vector<16x1xf32>
    %138 = vector.broadcast %137 : vector<16x1xf32> to vector<16x8xf32>
    %139 = arith.subf %135, %138 : vector<16x8xf32>
    %140 = math.exp %139 : vector<16x8xf32>
    %cst_46 = arith.constant dense<0.000000e+00> : vector<16xf32>
    %141 = vector.multi_reduction <add>, %140, %cst_46 [1] : vector<16x8xf32> to vector<16xf32>
    %142 = vector.shape_cast %141 : vector<16xf32> to vector<16x1xf32>
    %143 = tpu.reciprocal %142 : vector<16x1xf32> -> vector<16x1xf32>
    %144 = vector.broadcast %143 : vector<16x1xf32> to vector<16x8xf32>
    %145 = arith.mulf %140, %144 : vector<16x8xf32>
    %cst_47 = arith.constant dense<0.000000e+00> : vector<8x32xf32>
    %146 = tpu.matmul %145, %124, %cst_47 {dimension_numbers = #tpu.dot_dimension_numbers<[0], [0], [1], [1], [0, 1, 1, 1], [], []>} : vector<16x8xf32>, vector<16x32xf32>, vector<8x32xf32> -> vector<8x32xf32>
    %147 = vector.extract_strided_slice %146 {offsets = [0, 0], sizes = [1, 32], strides = [1, 1]} : vector<8x32xf32> to vector<1x32xf32>
    %148 = vector.extract_strided_slice %146 {offsets = [1, 0], sizes = [1, 32], strides = [1, 1]} : vector<8x32xf32> to vector<1x32xf32>
    %149 = vector.extract_strided_slice %146 {offsets = [2, 0], sizes = [1, 32], strides = [1, 1]} : vector<8x32xf32> to vector<1x32xf32>
    %150 = vector.extract_strided_slice %146 {offsets = [3, 0], sizes = [1, 32], strides = [1, 1]} : vector<8x32xf32> to vector<1x32xf32>
    %151 = vector.extract_strided_slice %146 {offsets = [4, 0], sizes = [1, 32], strides = [1, 1]} : vector<8x32xf32> to vector<1x32xf32>
    %152 = vector.extract_strided_slice %146 {offsets = [5, 0], sizes = [1, 32], strides = [1, 1]} : vector<8x32xf32> to vector<1x32xf32>
    %153 = vector.extract_strided_slice %146 {offsets = [6, 0], sizes = [1, 32], strides = [1, 1]} : vector<8x32xf32> to vector<1x32xf32>
    %154 = vector.extract_strided_slice %146 {offsets = [7, 0], sizes = [1, 32], strides = [1, 1]} : vector<8x32xf32> to vector<1x32xf32>
    %155 = tpu.concatenate %147, %148, %149, %150, %151, %152, %153, %154 in 1 : vector<1x32xf32>, vector<1x32xf32>, vector<1x32xf32>, vector<1x32xf32>, vector<1x32xf32>, vector<1x32xf32>, vector<1x32xf32>, vector<1x32xf32> -> vector<1x256xf32>
    %156 = vector.shape_cast %155 : vector<1x256xf32> to vector<1x1x256xf32>
    %c0_48 = arith.constant 0 : index
    %c0_49 = arith.constant 0 : index
    %c0_50 = arith.constant 0 : index
    %157 = vector.load %arg5[%c0_48, %c0_49, %c0_50] : memref<1x1x256xf32, #tpu.memory_space<vmem>>, vector<1x1x256xf32>
    tpu.vector_store %arg5[%c0_48, %c0_49, %c0_50], %156 {strides = array<i32>} : memref<1x1x256xf32, #tpu.memory_space<vmem>>, vector<1x1x256xf32>,
    %c0_51 = arith.constant 0 : index
    %c0_52 = arith.constant 0 : index
    %158 = vector.load %arg4[%c0_51, %c0_52] : memref<257x10xf32, #tpu.memory_space<vmem>>, vector<257x10xf32>
    %159 = vector.extract_strided_slice %158 {offsets = [0, 0], sizes = [256, 10], strides = [1, 1]} : vector<257x10xf32> to vector<256x10xf32>
    %cst_53 = arith.constant dense<0.000000e+00> : vector<1x10xf32>
    %160 = tpu.matmul %155, %159, %cst_53 {dimension_numbers = #tpu.dot_dimension_numbers<[1], [0], [0], [1], [0, 0, 1, 1], [], []>} : vector<1x256xf32>, vector<256x10xf32>, vector<1x10xf32> -> vector<1x10xf32>
    %161 = vector.extract_strided_slice %158 {offsets = [256, 0], sizes = [1, 10], strides = [1, 1]} : vector<257x10xf32> to vector<1x10xf32>
    %162 = arith.addf %160, %161 : vector<1x10xf32>
    %163 = vector.shape_cast %162 : vector<1x10xf32> to vector<1x1x10xf32>
    %c0_54 = arith.constant 0 : index
    %c0_55 = arith.constant 0 : index
    %c0_56 = arith.constant 0 : index
    %164 = vector.load %arg6[%c0_54, %c0_55, %c0_56] : memref<1x1x10xf32, #tpu.memory_space<vmem>>, vector<1x1x10xf32>
    tpu.vector_store %arg6[%c0_54, %c0_55, %c0_56], %163 {strides = array<i32>} : memref<1x1x10xf32, #tpu.memory_space<vmem>>, vector<1x1x10xf32>,
    return
  }
  func.func @transform_0(%arg0: i32) -> (i32, i32, i32) {
    %c0_i32 = arith.constant 0 : i32
    %c0_i32_0 = arith.constant 0 : i32
    %c0_i32_1 = arith.constant 0 : i32
    return %arg0, %c0_i32, %c0_i32_0 : i32, i32, i32
  }
  func.func @transform_1(%arg0: i32) -> (i32, i32, i32) {
    %c0_i32 = arith.constant 0 : i32
    %c0_i32_0 = arith.constant 0 : i32
    %c0_i32_1 = arith.constant 0 : i32
    return %arg0, %c0_i32, %c0_i32_0 : i32, i32, i32
  }
  func.func @transform_2(%arg0: i32) -> (i32, i32) {
    %c0_i32 = arith.constant 0 : i32
    %c0_i32_0 = arith.constant 0 : i32
    %c0_i32_1 = arith.constant 0 : i32
    return %c0_i32, %c0_i32_0 : i32, i32
  }
  func.func @transform_3(%arg0: i32) -> (i32, i32) {
    %c0_i32 = arith.constant 0 : i32
    %c0_i32_0 = arith.constant 0 : i32
    %c0_i32_1 = arith.constant 0 : i32
    return %c0_i32, %c0_i32_0 : i32, i32
  }
  func.func @transform_4(%arg0: i32) -> (i32, i32, i32) {
    %c0_i32 = arith.constant 0 : i32
    %c0_i32_0 = arith.constant 0 : i32
    %c0_i32_1 = arith.constant 0 : i32
    return %arg0, %c0_i32, %c0_i32_0 : i32, i32, i32
  }
  func.func @transform_5(%arg0: i32) -> (i32, i32, i32) {
    %c0_i32 = arith.constant 0 : i32
    %c0_i32_0 = arith.constant 0 : i32
    %c0_i32_1 = arith.constant 0 : i32
    return %arg0, %c0_i32, %c0_i32_0 : i32, i32, i32
  }
}

</mosaic_0001>

<llo_original>
// kernel: diffpool_forward.1
$region0: #{diffpool_forward.1}
  #allocation0 [shape = 'u32[]', space=smem, size = 0x4, offset = 0x4, fixed_abs, tag = 'smem constant byte address 0x4 - core index']
  #allocation1 [shape = 'u32[144,128]{1,0:T(1,128)}', space=vmem, size = 0x12000, scoped, tag = 'internal scratch']
  %s0 = inlined_call_operand.vmem [shape: f32[2,16,16], index: 0, kind: input, shape index: {}]
  %s1 = inlined_call_operand.vmem [shape: bf16[2,16,16], index: 1, kind: input, shape index: {}]
  %s2 = inlined_call_operand.vmem [shape: f32[432,64], index: 2, kind: input, shape index: {}]
  %s3 = inlined_call_operand.vmem [shape: f32[257,10], index: 3, kind: input, shape index: {}]
  %s4 = inlined_call_operand.vmem [shape: f32[2,1,256], index: 4, kind: output, shape index: {0}]
  %s5 = inlined_call_operand.hbm [shape: f32[2,1,10], index: 5, kind: output, shape index: {1}]
  %6 = xla_tuple %s4, %s5
  %s7 = sld [smem:[#allocation0]]
  $region57: #{diffpool_forward.1} parent=0
    _
  %s9 = ssub.s32 1, %s7
  %s10 = scalar_select 0, %s9, %s7
  $region1: #{diffpool_forward.1} parent=0
    #allocation2 [shape = 'u8[1024]{0}', space=vmem, size = 0x400, scoped, tag = 'output window, operand 1']
    #allocation3 [shape = 's32[2]{0}', space=sflag, size = 0x8, scoped, tag = 'scoped memory for diffpool_forward.1']
    %11 = vsyncpa [#allocation3], 0
    %s12 = scalar_lea.sflag [#allocation3], 1
    %13 = vsyncpa %s12, 0
    loop: start=0, step=1, limit=4
    $region2: #{diffpool_forward.1} parent=1 // loop_pre_header
      _
    $region3: #{diffpool_forward.1} parent=1 // loop_header
      %s15 = sphi 0, %s19
      %p16 = scmp.ge.s32.totalorder %s15, 4
      %s25 = sphi 0, %s27
      %s28 = sphi 0, %s25
      %s29 = sphi 0, %s28
      %s45 = sphi 0, %s29
      %s51 = sphi 0, %s53
      %s54 = sphi 0, %s51
      %s55 = sphi 0, %s54
      %s71 = sphi 0, %s55
      %s75 = sphi 0, %s75
      %s77 = sphi 0, %s75
      %s78 = sphi 0, %s77
      %s92 = sphi 0, %s78
      %s96 = sphi 0, %s96
      %s98 = sphi 0, %s96
      %s99 = sphi 0, %s98
      %s113 = sphi 0, %s99
      %s119 = sphi 0, %s121
      %s122 = sphi 0, %s119
      %s123 = sphi 0, %s122
      %s139 = sphi 0, %s123
      %s145 = sphi 0, %s147
      %s148 = sphi 0, %s145
      %s149 = sphi 0, %s148
      %s165 = sphi 0, %s149
    $region4: #{diffpool_forward.1} parent=1 // loop_header_branch
      %18 = sbr.rel (%p16) target = $region8
    $region5: #{diffpool_forward.1} parent=1 // loop_body
      %s20 = ssub.s32 %s15, 1
      %s21 = ssub.s32 %s15, 2
      %s22 = sadd.s32 %s15, 1
      %s23 = ssub.s32 %s15, %s22
      %p24 = scmp.eq.s32.totalorder %s23, 0
      %s26 = sadd.s32 %s25, 1
      %s27 = scalar_select %p24, %s25, %s26
      %p30 = pneg %p24
      %p31 = scmp.eq.s32.totalorder %s15, 1
      %p32 = por %p30, %p31
      %p33 = scmp.ne.s32.totalorder %s25, %s28
      %p34 = scmp.eq.s32.totalorder %s15, 0
      %p35 = por %p33, %p34
      %p36 = scmp.ne.s32.totalorder %s25, %s28
      %p37 = scmp.eq.s32.totalorder %s20, 1
      %p38 = por %p36, %p37
      %p39 = scmp.ne.s32.totalorder %s28, %s29
      %p40 = scmp.eq.s32.totalorder %s20, 0
      %p41 = por %p39, %p40
      %p42 = scmp.ne.s32.totalorder %s28, %s29
      %p43 = scmp.eq.s32.totalorder %s21, 1
      %p44 = por %p42, %p43
      %p46 = scmp.ne.s32.totalorder %s29, %s45
      %p47 = scmp.eq.s32.totalorder %s21, 0
      %p48 = por %p46, %p47
      %s49 = ssub.s32 %s15, %s22
      %p50 = scmp.eq.s32.totalorder %s49, 0
      %s52 = sadd.s32 %s51, 1
      %s53 = scalar_select %p50, %s51, %s52
      %p56 = pneg %p50
      %p57 = scmp.eq.s32.totalorder %s15, 1
      %p58 = por %p56, %p57
      %p59 = scmp.ne.s32.totalorder %s51, %s54
      %p60 = scmp.eq.s32.totalorder %s15, 0
      %p61 = por %p59, %p60
      %p62 = scmp.ne.s32.totalorder %s51, %s54
      %p63 = scmp.eq.s32.totalorder %s20, 1
      %p64 = por %p62, %p63
      %p65 = scmp.ne.s32.totalorder %s54, %s55
      %p66 = scmp.eq.s32.totalorder %s20, 0
      %p67 = por %p65, %p66
      %p68 = scmp.ne.s32.totalorder %s54, %s55
      %p69 = scmp.eq.s32.totalorder %s21, 1
      %p70 = por %p68, %p69
      %p72 = scmp.ne.s32.totalorder %s55, %s71
      %p73 = scmp.eq.s32.totalorder %s21, 0
      %p74 = por %p72, %p73
      %s76 = sadd.s32 %s75, 1
      %p79 = scmp.eq.s32.totalorder %s15, 1
      %p80 = scmp.ne.s32.totalorder %s75, %s77
      %p81 = scmp.eq.s32.totalorder %s15, 0
      %p82 = por %p80, %p81
      %p83 = scmp.ne.s32.totalorder %s75, %s77
      %p84 = scmp.eq.s32.totalorder %s20, 1
      %p85 = por %p83, %p84
      %p86 = scmp.ne.s32.totalorder %s77, %s78
      %p87 = scmp.eq.s32.totalorder %s20, 0
      %p88 = por %p86, %p87
      %p89 = scmp.ne.s32.totalorder %s77, %s78
      %p90 = scmp.eq.s32.totalorder %s21, 1
      %p91 = por %p89, %p90
      %p93 = scmp.ne.s32.totalorder %s78, %s92
      %p94 = scmp.eq.s32.totalorder %s21, 0
      %p95 = por %p93, %p94
      %s97 = sadd.s32 %s96, 1
      %p100 = scmp.eq.s32.totalorder %s15, 1
      %p101 = scmp.ne.s32.totalorder %s96, %s98
      %p102 = scmp.eq.s32.totalorder %s15, 0
      %p103 = por %p101, %p102
      %p104 = scmp.ne.s32.totalorder %s96, %s98
      %p105 = scmp.eq.s32.totalorder %s20, 1
      %p106 = por %p104, %p105
      %p107 = scmp.ne.s32.totalorder %s98, %s99
      %p108 = scmp.eq.s32.totalorder %s20, 0
      %p109 = por %p107, %p108
      %p110 = scmp.ne.s32.totalorder %s98, %s99
      %p111 = scmp.eq.s32.totalorder %s21, 1
      %p112 = por %p110, %p111
      %p114 = scmp.ne.s32.totalorder %s99, %s113
      %p115 = scmp.eq.s32.totalorder %s21, 0
      %p116 = por %p114, %p115
      %s117 = ssub.s32 %s15, %s22
      %p118 = scmp.eq.s32.totalorder %s117, 0
      %s120 = sadd.s32 %s119, 1
      %s121 = scalar_select %p118, %s119, %s120
      %p124 = pneg %p118
      %p125 = scmp.eq.s32.totalorder %s15, 1
      %p126 = por %p124, %p125
      %p127 = scmp.ne.s32.totalorder %s119, %s122
      %p128 = scmp.eq.s32.totalorder %s15, 0
      %p129 = por %p127, %p128
      %p130 = scmp.ne.s32.totalorder %s119, %s122
      %p131 = scmp.eq.s32.totalorder %s20, 1
      %p132 = por %p130, %p131
      %p133 = scmp.ne.s32.totalorder %s122, %s123
      %p134 = scmp.eq.s32.totalorder %s20, 0
      %p135 = por %p133, %p134
      %p136 = scmp.ne.s32.totalorder %s122, %s123
      %p137 = scmp.eq.s32.totalorder %s21, 1
      %p138 = por %p136, %p137
      %p140 = scmp.ne.s32.totalorder %s123, %s139
      %p141 = scmp.eq.s32.totalorder %s21, 0
      %p142 = por %p140, %p141
      %s143 = ssub.s32 %s15, %s22
      %p144 = scmp.eq.s32.totalorder %s143, 0
      %s146 = sadd.s32 %s145, 1
      %s147 = scalar_select %p144, %s145, %s146
      %p150 = pneg %p144
      %p151 = scmp.eq.s32.totalorder %s15, 1
      %p152 = por %p150, %p151
      %p153 = scmp.ne.s32.totalorder %s145, %s148
      %p154 = scmp.eq.s32.totalorder %s15, 0
      %p155 = por %p153, %p154
      %p156 = scmp.ne.s32.totalorder %s145, %s148
      %p157 = scmp.eq.s32.totalorder %s20, 1
      %p158 = por %p156, %p157
      %p159 = scmp.ne.s32.totalorder %s148, %s149
      %p160 = scmp.eq.s32.totalorder %s20, 0
      %p161 = por %p159, %p160
      %p162 = scmp.ne.s32.totalorder %s148, %s149
      %p163 = scmp.eq.s32.totalorder %s21, 1
      %p164 = por %p162, %p163
      %p166 = scmp.ne.s32.totalorder %s149, %s165
      %p167 = scmp.eq.s32.totalorder %s21, 0
      %p168 = por %p166, %p167
      %p169 = scmp.le.s32.totalorder 1, %s15
      %p170 = scmp.lt.s32.totalorder %s15, 3
      %p171 = pnand %p169, %p170
      %p172 = pneg %p171
      // Predicated region
      $region9: #{diffpool_forward.1} parent=5 // pred_check
        _
      $region10: #{diffpool_forward.1} parent=5 // pred_check_branch
        %174 = sbr.rel (%p171) target = $region12
      $region11: #{diffpool_forward.1} parent=5 // pred_region
        %s175 = ssub.s32 %s15, 1
        // Predicated region
        $region13: #{diffpool_forward.1} parent=11 // pred_check
          %p176 = pneg %p88
        $region14: #{diffpool_forward.1} parent=11 // pred_check_branch
          %178 = sbr.rel (%p176) target = $region16
        $region15: #{diffpool_forward.1} parent=11 // pred_region
          _
        $region16: #{diffpool_forward.1} parent=11 // pred_fallthru
          _
        // Predicated region
        $region17: #{diffpool_forward.1} parent=11 // pred_check
          %p179 = pneg %p109
        $region18: #{diffpool_forward.1} parent=11 // pred_check_branch
          %181 = sbr.rel (%p179) target = $region20
        $region19: #{diffpool_forward.1} parent=11 // pred_region
          _
        $region20: #{diffpool_forward.1} parent=11 // pred_fallthru
          _
      $region12: #{diffpool_forward.1} parent=5 // pred_fallthru
        _
      %p182 = scmp.lt.s32.totalorder %s15, 2
      // Predicated region
      $region21: #{diffpool_forward.1} parent=5 // pred_check
        %p183 = pneg %p182
      $region22: #{diffpool_forward.1} parent=5 // pred_check_branch
        %185 = sbr.rel (%p183) target = $region24
      $region23: #{diffpool_forward.1} parent=5 // pred_region
        // Predicated region
        $region25: #{diffpool_forward.1} parent=23 // pred_check
          %p186 = pneg %p35
        $region26: #{diffpool_forward.1} parent=23 // pred_check_branch
          %188 = sbr.rel (%p186) target = $region28
        $region27: #{diffpool_forward.1} parent=23 // pred_region
          %p189 = scmp.lt.s32.totalorder %s15, 1
          %s190 = scalar_select %p189, %s15, 1
          %s191 = smul.addr %s190, 2
          %s192 = smul.addr %s191, 8
          %s193 = scalar_lea.vmem %s0, %s192
        $region28: #{diffpool_forward.1} parent=23 // pred_fallthru
          _
        // Predicated region
        $region29: #{diffpool_forward.1} parent=23 // pred_check
          %p194 = pneg %p61
        $region30: #{diffpool_forward.1} parent=23 // pred_check_branch
          %196 = sbr.rel (%p194) target = $region32
        $region31: #{diffpool_forward.1} parent=23 // pred_region
          %p197 = scmp.lt.s32.totalorder %s15, 1
          %s198 = scalar_select %p197, %s15, 1
          %s199 = smul.addr %s198, 2
          %s200 = smul.addr %s199, 4
          %s201 = scalar_lea.vmem %s1, %s200
        $region32: #{diffpool_forward.1} parent=23 // pred_fallthru
          _
      $region24: #{diffpool_forward.1} parent=5 // pred_fallthru
        _
      %p202 = scmp.le.s32.totalorder 1, %s15
      %p203 = scmp.lt.s32.totalorder %s15, 3
      %p204 = pnand %p202, %p203
      %p205 = pneg %p204
      // Predicated region
      $region33: #{diffpool_forward.1} parent=5 // pred_check
        _
      $region34: #{diffpool_forward.1} parent=5 // pred_check_branch
        %207 = sbr.rel (%p204) target = $region36
      $region35: #{diffpool_forward.1} parent=5 // pred_region
        %s208 = ssub.s32 %s15, 1
        %p209 = scmp.lt.s32.totalorder %s20, 1
        %s210 = scalar_select %p209, %s20, 1
        %s211 = smul.addr %s210, 2
        %s212 = smul.addr %s211, 8
        %s213 = scalar_lea.vmem %s0, %s212
        %p214 = pneg %p41
        %p215 = pneg %p38
        %p216 = scmp.lt.s32.totalorder %s20, 1
        %s217 = scalar_select %p216, %s20, 1
        %s218 = smul.addr %s217, 2
        %s219 = smul.addr %s218, 4
        %s220 = scalar_lea.vmem %s1, %s219
        %p221 = pneg %p67
        %p222 = pneg %p64
        %p223 = pneg %p88
        %p224 = pneg %p85
        %p225 = pneg %p109
        %p226 = pneg %p106
        %p227 = pneg %p135
        %p228 = pneg %p132
        %p229 = scmp.lt.s32.totalorder %s20, 1
        %s230 = scalar_select %p229, %s20, 1
        %s231 = smul.addr %s230, 2
        %s232 = scalar_lea.vmem %s4, %s231
        %p233 = pneg %p161
        %p234 = pneg %p158
        %s235 = sand.u32 %s148, 1
        %s236 = scalar_lea.sflag [#allocation3], %s235
        %s237 = sand.u32 %s148, 1
        %s238 = scalar_lea.vmem [#allocation2], %s237
        %p239 = scmp.lt.s32.totalorder %s20, 1
        %s240 = scalar_select %p239, %s20, 1
        %s241 = smul.addr %s240, 2
        %s242 = smul.addr %s241, 8
        %s243 = scalar_lea.vmem %s0, %s242
        %p244 = scmp.lt.s32.totalorder %s20, 1
        %s245 = scalar_select %p244, %s20, 1
        %s246 = smul.addr %s245, 2
        %s247 = smul.addr %s246, 4
        %s248 = scalar_lea.vmem %s1, %s247
        %p249 = scmp.lt.s32.totalorder %s20, 1
        %s250 = scalar_select %p249, %s20, 1
        %s251 = smul.addr %s250, 2
        %s252 = scalar_lea.vmem %s4, %s251
        %v254 = vld [vmem:[%s248] sm:$0xf]
        %v255 = vld [vmem:[%s248 + $0x4] sm:$0xf]
        %v256 = vunpack.c.l.bf16 %v254
        %v257 = vunpack.c.l.bf16 %v255
        %vm258 = vcmask 130048
        %v259 = vsel %vm258, %v256, 0.0
        %260 = vadd.xlane.f32.xlu0 %v259
        %v261 = vpop.xlane.xlu0 %260
        %v262 = vsel %vm258, %v257, 0.0
        %263 = vadd.xlane.f32.xlu0 %v262
        %v264 = vpop.xlane.xlu0 %263
        %v265 = vmax.f32 %v261, 1.0
        %v266 = vmax.f32 %v264, 1.0
        %v267 = vrcp.pop %v265
        %v268 = vrcp.pop %v266
        %v269 = vld [vmem:[%s243] sm:$0xff]
        %v270 = vld [vmem:[%s243 + $0x8] sm:$0xff]
        %v271 = vld [vmem:[%s2] sm:$0xff]
        %v272 = vld [vmem:[%s2 + $0x8] sm:$0xff]
        %v273 = vld [vmem:[%s2 + $0x10] sm:$0x1]
        %v274 = vlaneseq
        %v275 = vshrl.u32 %v274, 7
        %v276 = vsub.s32 0, %v275
        %v277 = vrot.slane %v273, %v276
        %v279 = vsel %vm258, %v269, 0
        %v282 = vsel %vm258, %v270, 0
        %284 = vmatprep.subr.mxu0 0.0
        %285 = vmatpush1.msra.mxu0 %v271
        %286 = vmatprep.subr.mxu0 0.0
        %287 = vmatpush1.msra.mxu0 %v272
        %288 = vmatprep.subr.mxu0 0.0
        %289 = vmatpush1.msra.mxu0 0.0
        %290 = vmatprep.subr.mxu0 0.0
        %291 = vmatpush1.msra.mxu0 0.0
        %292 = vmatprep.subr.mxu0 0.0
        %293 = vmatpush1.msra.mxu0 0.0
        %294 = vmatprep.subr.mxu0 0.0
        %295 = vmatpush1.msra.mxu0 0.0
        %296 = vmatprep.subr.mxu0 0.0
        %297 = vmatpush1.msra.mxu0 0.0
        %298 = vmatprep.subr.mxu0 0.0
        %299 = vmatpush1.msra.mxu0 0.0
        %300 = vmatprep.subr.mxu0 0.0
        %301 = vmatpush1.msra.mxu0 0.0
        %302 = vmatprep.subr.mxu0 0.0
        %303 = vmatpush1.msra.mxu0 0.0
        %304 = vmatprep.subr.mxu0 0.0
        %305 = vmatpush1.msra.mxu0 0.0
        %306 = vmatprep.subr.mxu0 0.0
        %307 = vmatpush1.msra.mxu0 0.0
        %308 = vmatprep.subr.mxu0 0.0
        %309 = vmatpush1.msra.mxu0 0.0
        %310 = vmatprep.subr.mxu0 0.0
        %311 = vmatpush1.msra.mxu0 0.0
        %312 = vmatprep.subr.mxu0 0.0
        %313 = vmatpush1.msra.mxu0 0.0
        %314 = vmatprep.subr.mxu0 0.0
        %315 = vmatpush1.msra.mxu0 0.0
        %316 = vmatprep.subr.mxu0 0.0
        %317 = vmatpush1.msra.mxu0 0.0
        %318 = vmatprep.subr.mxu0 0.0
        %319 = vmatpush1.msra.mxu0 0.0
        %320 = vmatprep.subr.mxu0 0.0
        %321 = vmatpush1.msra.mxu0 0.0
        %322 = vmatprep.subr.mxu0 0.0
        %323 = vmatpush1.msra.mxu0 0.0
        %324 = vmatprep.subr.mxu0 0.0
        %325 = vmatpush1.msra.mxu0 0.0
        %326 = vmatprep.subr.mxu0 0.0
        %327 = vmatpush1.msra.mxu0 0.0
        %328 = vmatprep.subr.mxu0 0.0
        %329 = vmatpush1.msra.mxu0 0.0
        %330 = vmatprep.subr.mxu0 0.0
        %331 = vmatpush1.msra.mxu0 0.0
        %332 = vmatprep.subr.mxu0 0.0
        %333 = vmatpush1.msra.mxu0 0.0
        %334 = vmatprep.subr.mxu0 0.0
        %335 = vmatpush1.msra.mxu0 0.0
        %336 = vmatprep.subr.mxu0 0.0
        %337 = vmatpush1.msra.mxu0 0.0
        %338 = vmatprep.subr.mxu0 0.0
        %339 = vmatpush1.msra.mxu0 0.0
        %340 = vmatprep.subr.mxu0 0.0
        %341 = vmatpush1.msra.mxu0 0.0
        %342 = vmatprep.subr.mxu0 0.0
        %343 = vmatpush1.msra.mxu0 0.0
        %344 = vmatprep.subr.mxu0 0.0
        %345 = vmatpush1.msra.mxu0 0.0
        %346 = vmatprep.subr.mxu0 0.0
        %347 = vmatpush1.msra.mxu0 0.0
        %348 = vmatprep.mubr.f32.mxu0 0.0
        %349 = vmatmul.mubr.f32.gmra.mrb[0].mxu0 %v279
        %v350 = vpop.f32.mrb[0].mxu0
        %v351 = vadd.f32 %v277, %v350
        %v352 = vpop.f32.mrb[0].mxu0
        %353 = vmatprep.mubr.f32.mxu0 0.0
        %354 = vmatmul.mubr.f32.gmra.mrb[0].mxu0 %v282
        %v355 = vpop.f32.mrb[0].mxu0
        %v356 = vadd.f32 %v277, %v355
        %v357 = vpop.f32.mrb[0].mxu0
        %358 = vdwg.mxu0
        %v359 = vmax.f32 %v351, 0.0
        %v360 = vmax.f32 %v356, 0.0
        %v361 = vpack.c.bf16 %v360, %v359
        %v364 = vunpack.c.l.b16 %v254
        %v365 = vunpack.c.l.b16 %v255
        %v366 = vpack.c.b16 %v365, %v364
        %v368 = vsel %vm258, %v366, 0
        %370 = vmatprep.subr.bf16.mxu0 0
        %371 = vmatpush1.bf16.msra.mxu0 %v361
        %372 = vmatprep.subr.bf16.mxu0 0
        %373 = vmatpush1.bf16.msra.mxu0 0
        %374 = vmatprep.subr.bf16.mxu0 0
        %375 = vmatpush1.bf16.msra.mxu0 0
        %376 = vmatprep.subr.bf16.mxu0 0
        %377 = vmatpush1.bf16.msra.mxu0 0
        %378 = vmatprep.subr.bf16.mxu0 0
        %379 = vmatpush1.bf16.msra.mxu0 0
        %380 = vmatprep.subr.bf16.mxu0 0
        %381 = vmatpush1.bf16.msra.mxu0 0
        %382 = vmatprep.subr.bf16.mxu0 0
        %383 = vmatpush1.bf16.msra.mxu0 0
        %384 = vmatprep.subr.bf16.mxu0 0
        %385 = vmatpush1.bf16.msra.mxu0 0
        %386 = vmatprep.subr.bf16.mxu0 0
        %387 = vmatpush1.bf16.msra.mxu0 0
        %388 = vmatprep.subr.bf16.mxu0 0
        %389 = vmatpush1.bf16.msra.mxu0 0
        %390 = vmatprep.subr.bf16.mxu0 0
        %391 = vmatpush1.bf16.msra.mxu0 0
        %392 = vmatprep.subr.bf16.mxu0 0
        %393 = vmatpush1.bf16.msra.mxu0 0
        %394 = vmatprep.subr.bf16.mxu0 0
        %395 = vmatpush1.bf16.msra.mxu0 0
        %396 = vmatprep.subr.bf16.mxu0 0
        %397 = vmatpush1.bf16.msra.mxu0 0
        %398 = vmatprep.subr.bf16.mxu0 0
        %399 = vmatpush1.bf16.msra.mxu0 0
        %400 = vmatprep.subr.bf16.mxu0 0
        %401 = vmatpush1.bf16.msra.mxu0 0
        %402 = vmatprep.mubr.bf16.mxu0 0
        %403 = vmatmul.mubr.bf16.gmra.mrb[0].mxu0 %v368
        %v404 = vpop.f32.mrb[0].mxu0
        %v405 = vadd.f32 0.0, %v404
        %v406 = vpop.f32.mrb[0].mxu0
        %v407 = vpop.f32.mrb[0].mxu0
        %v408 = vadd.f32 0.0, %v407
        %v409 = vpop.f32.mrb[0].mxu0
        %410 = vdwg.mxu0
        %v411 = vmul.f32 %v405, %v267
        %v412 = vmul.f32 %v408, %v268
        %415 = vrot.lane.b32.xlu0 %v411, 16
        %v416 = vpop.permute.xlu0 %415
        %417 = vrot.lane.b32.xlu0 %v412, 16
        %v418 = vpop.permute.xlu0 %417
        %v421 = vsel %vm258, %v269, %v416
        %v422 = vsel %vm258, %v270, %v418
        %v423 = vld [vmem:[%s2 + $0x18] sm:$0xff]
        %v424 = vld [vmem:[%s2 + $0x20] sm:$0xff]
        %v425 = vld [vmem:[%s2 + $0x28] sm:$0xff]
        %v426 = vld [vmem:[%s2 + $0x30] sm:$0xff]
        %v427 = vld [vmem:[%s2 + $0x38] sm:$0x1]
        %v428 = vlaneseq
        %v429 = vshrl.u32 %v428, 7
        %v430 = vsub.s32 0, %v429
        %v431 = vrot.slane %v427, %v430
        %vm432 = vcmask 261120
        %v434 = vsel %vm432, %v421, 0
        %v437 = vsel %vm432, %v422, 0
        %439 = vmatprep.subr.mxu0 0.0
        %440 = vmatpush1.msra.mxu0 %v423
        %441 = vmatprep.subr.mxu0 0.0
        %442 = vmatpush1.msra.mxu0 %v424
        %443 = vmatprep.subr.mxu0 0.0
        %444 = vmatpush1.msra.mxu0 %v425
        %445 = vmatprep.subr.mxu0 0.0
        %446 = vmatpush1.msra.mxu0 %v426
        %447 = vmatprep.subr.mxu0 0.0
        %448 = vmatpush1.msra.mxu0 0.0
        %449 = vmatprep.subr.mxu0 0.0
        %450 = vmatpush1.msra.mxu0 0.0
        %451 = vmatprep.subr.mxu0 0.0
        %452 = vmatpush1.msra.mxu0 0.0
        %453 = vmatprep.subr.mxu0 0.0
        %454 = vmatpush1.msra.mxu0 0.0
        %455 = vmatprep.subr.mxu0 0.0
        %456 = vmatpush1.msra.mxu0 0.0
        %457 = vmatprep.subr.mxu0 0.0
        %458 = vmatpush1.msra.mxu0 0.0
        %459 = vmatprep.subr.mxu0 0.0
        %460 = vmatpush1.msra.mxu0 0.0
        %461 = vmatprep.subr.mxu0 0.0
        %462 = vmatpush1.msra.mxu0 0.0
        %463 = vmatprep.subr.mxu0 0.0
        %464 = vmatpush1.msra.mxu0 0.0
        %465 = vmatprep.subr.mxu0 0.0
        %466 = vmatpush1.msra.mxu0 0.0
        %467 = vmatprep.subr.mxu0 0.0
        %468 = vmatpush1.msra.mxu0 0.0
        %469 = vmatprep.subr.mxu0 0.0
        %470 = vmatpush1.msra.mxu0 0.0
        %471 = vmatprep.subr.mxu0 0.0
        %472 = vmatpush1.msra.mxu0 0.0
        %473 = vmatprep.subr.mxu0 0.0
        %474 = vmatpush1.msra.mxu0 0.0
        %475 = vmatprep.subr.mxu0 0.0
        %476 = vmatpush1.msra.mxu0 0.0
        %477 = vmatprep.subr.mxu0 0.0
        %478 = vmatpush1.msra.mxu0 0.0
        %479 = vmatprep.subr.mxu0 0.0
        %480 = vmatpush1.msra.mxu0 0.0
        %481 = vmatprep.subr.mxu0 0.0
        %482 = vmatpush1.msra.mxu0 0.0
        %483 = vmatprep.subr.mxu0 0.0
        %484 = vmatpush1.msra.mxu0 0.0
        %485 = vmatprep.subr.mxu0 0.0
        %486 = vmatpush1.msra.mxu0 0.0
        %487 = vmatprep.subr.mxu0 0.0
        %488 = vmatpush1.msra.mxu0 0.0
        %489 = vmatprep.subr.mxu0 0.0
        %490 = vmatpush1.msra.mxu0 0.0
        %491 = vmatprep.subr.mxu0 0.0
        %492 = vmatpush1.msra.mxu0 0.0
        %493 = vmatprep.subr.mxu0 0.0
        %494 = vmatpush1.msra.mxu0 0.0
        %495 = vmatprep.subr.mxu0 0.0
        %496 = vmatpush1.msra.mxu0 0.0
        %497 = vmatprep.subr.mxu0 0.0
        %498 = vmatpush1.msra.mxu0 0.0
        %499 = vmatprep.subr.mxu0 0.0
        %500 = vmatpush1.msra.mxu0 0.0
        %501 = vmatprep.subr.mxu0 0.0
        %502 = vmatpush1.msra.mxu0 0.0
        %503 = vmatprep.mubr.f32.mxu0 0.0
        %504 = vmatmul.mubr.f32.gmra.mrb[0].mxu0 %v434
        %v505 = vpop.f32.mrb[0].mxu0
        %v506 = vadd.f32 %v431, %v505
        %v507 = vpop.f32.mrb[0].mxu0
        %508 = vmatprep.mubr.f32.mxu0 0.0
        %509 = vmatmul.mubr.f32.gmra.mrb[0].mxu0 %v437
        %v510 = vpop.f32.mrb[0].mxu0
        %v511 = vadd.f32 %v431, %v510
        %v512 = vpop.f32.mrb[0].mxu0
        %513 = vdwg.mxu0
        %v514 = vmul.f32 %v506, %v506
        %v515 = vmul.f32 %v511, %v511
        %v516 = vsel %vm432, %v514, 0.0
        %517 = vadd.xlane.f32.xlu0 %v516
        %v518 = vpop.xlane.xlu0 %517
        %v519 = vsel %vm432, %v515, 0.0
        %520 = vadd.xlane.f32.xlu0 %v519
        %v521 = vpop.xlane.xlu0 %520
        %v522 = vmax.f32 %v518, 1e-12
        %v523 = vmax.f32 %v521, 1e-12
        %v524 = vrsqrt.pop %v522
        %v525 = vrsqrt.pop %v523
        %v526 = vmul.f32 %v506, %v524
        %v527 = vmul.f32 %v511, %v525
        %v528 = vmax.f32 %v526, 0.0
        %v529 = vmax.f32 %v527, 0.0
        %v530 = vld [vmem:[%s2 + $0x40] sm:$0xff]
        %v531 = vld [vmem:[%s2 + $0x48] sm:$0xff]
        %v532 = vld [vmem:[%s2 + $0x50] sm:$0xff]
        %v533 = vld [vmem:[%s2 + $0x58] sm:$0xff]
        %v534 = vld [vmem:[%s2 + $0x60] sm:$0x1]
        %v535 = vlaneseq
        %v536 = vshrl.u32 %v535, 7
        %v537 = vsub.s32 0, %v536
        %v538 = vrot.slane %v534, %v537
        %v540 = vsel %vm432, %v528, 0
        %v543 = vsel %vm432, %v529, 0
        %545 = vmatprep.subr.mxu0 0.0
        %546 = vmatpush1.msra.mxu0 %v530
        %547 = vmatprep.subr.mxu0 0.0
        %548 = vmatpush1.msra.mxu0 %v531
        %549 = vmatprep.subr.mxu0 0.0
        %550 = vmatpush1.msra.mxu0 %v532
        %551 = vmatprep.subr.mxu0 0.0
        %552 = vmatpush1.msra.mxu0 %v533
        %553 = vmatprep.subr.mxu0 0.0
        %554 = vmatpush1.msra.mxu0 0.0
        %555 = vmatprep.subr.mxu0 0.0
        %556 = vmatpush1.msra.mxu0 0.0
        %557 = vmatprep.subr.mxu0 0.0
        %558 = vmatpush1.msra.mxu0 0.0
        %559 = vmatprep.subr.mxu0 0.0
        %560 = vmatpush1.msra.mxu0 0.0
        %561 = vmatprep.subr.mxu0 0.0
        %562 = vmatpush1.msra.mxu0 0.0
        %563 = vmatprep.subr.mxu0 0.0
        %564 = vmatpush1.msra.mxu0 0.0
        %565 = vmatprep.subr.mxu0 0.0
        %566 = vmatpush1.msra.mxu0 0.0
        %567 = vmatprep.subr.mxu0 0.0
        %568 = vmatpush1.msra.mxu0 0.0
        %569 = vmatprep.subr.mxu0 0.0
        %570 = vmatpush1.msra.mxu0 0.0
        %571 = vmatprep.subr.mxu0 0.0
        %572 = vmatpush1.msra.mxu0 0.0
        %573 = vmatprep.subr.mxu0 0.0
        %574 = vmatpush1.msra.mxu0 0.0
        %575 = vmatprep.subr.mxu0 0.0
        %576 = vmatpush1.msra.mxu0 0.0
        %577 = vmatprep.subr.mxu0 0.0
        %578 = vmatpush1.msra.mxu0 0.0
        %579 = vmatprep.subr.mxu0 0.0
        %580 = vmatpush1.msra.mxu0 0.0
        %581 = vmatprep.subr.mxu0 0.0
        %582 = vmatpush1.msra.mxu0 0.0
        %583 = vmatprep.subr.mxu0 0.0
        %584 = vmatpush1.msra.mxu0 0.0
        %585 = vmatprep.subr.mxu0 0.0
        %586 = vmatpush1.msra.mxu0 0.0
        %587 = vmatprep.subr.mxu0 0.0
        %588 = vmatpush1.msra.mxu0 0.0
        %589 = vmatprep.subr.mxu0 0.0
        %590 = vmatpush1.msra.mxu0 0.0
        %591 = vmatprep.subr.mxu0 0.0
        %592 = vmatpush1.msra.mxu0 0.0
        %593 = vmatprep.subr.mxu0 0.0
        %594 = vmatpush1.msra.mxu0 0.0
        %595 = vmatprep.subr.mxu0 0.0
        %596 = vmatpush1.msra.mxu0 0.0
        %597 = vmatprep.subr.mxu0 0.0
        %598 = vmatpush1.msra.mxu0 0.0
        %599 = vmatprep.subr.mxu0 0.0
        %600 = vmatpush1.msra.mxu0 0.0
        %601 = vmatprep.subr.mxu0 0.0
        %602 = vmatpush1.msra.mxu0 0.0
        %603 = vmatprep.subr.mxu0 0.0
        %604 = vmatpush1.msra.mxu0 0.0
        %605 = vmatprep.subr.mxu0 0.0
        %606 = vmatpush1.msra.mxu0 0.0
        %607 = vmatprep.subr.mxu0 0.0
        %608 = vmatpush1.msra.mxu0 0.0
        %609 = vmatprep.mubr.f32.mxu0 0.0
        %610 = vmatmul.mubr.f32.gmra.mrb[0].mxu0 %v540
        %v611 = vpop.f32.mrb[0].mxu0
        %v612 = vadd.f32 %v538, %v611
        %v613 = vpop.f32.mrb[0].mxu0
        %614 = vmatprep.mubr.f32.mxu0 0.0
        %615 = vmatmul.mubr.f32.gmra.mrb[0].mxu0 %v543
        %v616 = vpop.f32.mrb[0].mxu0
        %v617 = vadd.f32 %v538, %v616
        %v618 = vpop.f32.mrb[0].mxu0
        %619 = vdwg.mxu0
        %v620 = vmax.f32 %v612, 0.0
        %v621 = vmax.f32 %v617, 0.0
        %v622 = vpack.c.bf16 %v621, %v620
        %623 = vmatprep.subr.bf16.mxu0 0
        %624 = vmatpush1.bf16.msra.mxu0 %v622
        %625 = vmatprep.subr.bf16.mxu0 0
        %626 = vmatpush1.bf16.msra.mxu0 0
        %627 = vmatprep.subr.bf16.mxu0 0
        %628 = vmatpush1.bf16.msra.mxu0 0
        %629 = vmatprep.subr.bf16.mxu0 0
        %630 = vmatpush1.bf16.msra.mxu0 0
        %631 = vmatprep.subr.bf16.mxu0 0
        %632 = vmatpush1.bf16.msra.mxu0 0
        %633 = vmatprep.subr.bf16.mxu0 0
        %634 = vmatpush1.bf16.msra.mxu0 0
        %635 = vmatprep.subr.bf16.mxu0 0
        %636 = vmatpush1.bf16.msra.mxu0 0
        %637 = vmatprep.subr.bf16.mxu0 0
        %638 = vmatpush1.bf16.msra.mxu0 0
        %639 = vmatprep.subr.bf16.mxu0 0
        %640 = vmatpush1.bf16.msra.mxu0 0
        %641 = vmatprep.subr.bf16.mxu0 0
        %642 = vmatpush1.bf16.msra.mxu0 0
        %643 = vmatprep.subr.bf16.mxu0 0
        %644 = vmatpush1.bf16.msra.mxu0 0
        %645 = vmatprep.subr.bf16.mxu0 0
        %646 = vmatpush1.bf16.msra.mxu0 0
        %647 = vmatprep.subr.bf16.mxu0 0
        %648 = vmatpush1.bf16.msra.mxu0 0
        %649 = vmatprep.subr.bf16.mxu0 0
        %650 = vmatpush1.bf16.msra.mxu0 0
        %651 = vmatprep.subr.bf16.mxu0 0
        %652 = vmatpush1.bf16.msra.mxu0 0
        %653 = vmatprep.subr.bf16.mxu0 0
        %654 = vmatpush1.bf16.msra.mxu0 0
        %655 = vmatprep.mubr.bf16.mxu0 0
        %656 = vmatmul.mubr.bf16.gmra.mrb[0].mxu0 %v368
        %v657 = vpop.f32.mrb[0].mxu0
        %v658 = vadd.f32 0.0, %v657
        %v659 = vpop.f32.mrb[0].mxu0
        %v660 = vpop.f32.mrb[0].mxu0
        %v661 = vadd.f32 0.0, %v660
        %v662 = vpop.f32.mrb[0].mxu0
        %663 = vdwg.mxu0
        %v664 = vmul.f32 %v658, %v267
        %v665 = vmul.f32 %v661, %v268
        %668 = vrot.lane.b32.xlu0 %v664, 32
        %v669 = vpop.permute.xlu0 %668
        %670 = vrot.lane.b32.xlu0 %v665, 32
        %v671 = vpop.permute.xlu0 %670
        %v674 = vsel %vm432, %v528, %v669
        %v675 = vsel %vm432, %v529, %v671
        %v676 = vld [vmem:[%s2 + $0x68] sm:$0xff]
        %v677 = vld [vmem:[%s2 + $0x70] sm:$0xff]
        %v678 = vld [vmem:[%s2 + $0x78] sm:$0xff]
        %v679 = vld [vmem:[%s2 + $0x80] sm:$0xff]
        %v680 = vld [vmem:[%s2 + $0x88] sm:$0xff]
        %v681 = vld [vmem:[%s2 + $0x90] sm:$0xff]
        %v682 = vld [vmem:[%s2 + $0x98] sm:$0xff]
        %v683 = vld [vmem:[%s2 + $0xa0] sm:$0xff]
        %v684 = vld [vmem:[%s2 + $0xa8] sm:$0x1]
        %v685 = vlaneseq
        %v686 = vshrl.u32 %v685, 7
        %v687 = vsub.s32 0, %v686
        %v688 = vrot.slane %v684, %v687
        %vm689 = vcmask 523264
        %v691 = vsel %vm689, %v674, 0
        %v694 = vsel %vm689, %v675, 0
        %696 = vmatprep.subr.mxu0 0.0
        %697 = vmatpush1.msra.mxu0 %v676
        %698 = vmatprep.subr.mxu0 0.0
        %699 = vmatpush1.msra.mxu0 %v677
        %700 = vmatprep.subr.mxu0 0.0
        %701 = vmatpush1.msra.mxu0 %v678
        %702 = vmatprep.subr.mxu0 0.0
        %703 = vmatpush1.msra.mxu0 %v679
        %704 = vmatprep.subr.mxu0 0.0
        %705 = vmatpush1.msra.mxu0 %v680
        %706 = vmatprep.subr.mxu0 0.0
        %707 = vmatpush1.msra.mxu0 %v681
        %708 = vmatprep.subr.mxu0 0.0
        %709 = vmatpush1.msra.mxu0 %v682
        %710 = vmatprep.subr.mxu0 0.0
        %711 = vmatpush1.msra.mxu0 %v683
        %712 = vmatprep.subr.mxu0 0.0
        %713 = vmatpush1.msra.mxu0 0.0
        %714 = vmatprep.subr.mxu0 0.0
        %715 = vmatpush1.msra.mxu0 0.0
        %716 = vmatprep.subr.mxu0 0.0
        %717 = vmatpush1.msra.mxu0 0.0
        %718 = vmatprep.subr.mxu0 0.0
        %719 = vmatpush1.msra.mxu0 0.0
        %720 = vmatprep.subr.mxu0 0.0
        %721 = vmatpush1.msra.mxu0 0.0
        %722 = vmatprep.subr.mxu0 0.0
        %723 = vmatpush1.msra.mxu0 0.0
        %724 = vmatprep.subr.mxu0 0.0
        %725 = vmatpush1.msra.mxu0 0.0
        %726 = vmatprep.subr.mxu0 0.0
        %727 = vmatpush1.msra.mxu0 0.0
        %728 = vmatprep.subr.mxu0 0.0
        %729 = vmatpush1.msra.mxu0 0.0
        %730 = vmatprep.subr.mxu0 0.0
        %731 = vmatpush1.msra.mxu0 0.0
        %732 = vmatprep.subr.mxu0 0.0
        %733 = vmatpush1.msra.mxu0 0.0
        %734 = vmatprep.subr.mxu0 0.0
        %735 = vmatpush1.msra.mxu0 0.0
        %736 = vmatprep.subr.mxu0 0.0
        %737 = vmatpush1.msra.mxu0 0.0
        %738 = vmatprep.subr.mxu0 0.0
        %739 = vmatpush1.msra.mxu0 0.0
        %740 = vmatprep.subr.mxu0 0.0
        %741 = vmatpush1.msra.mxu0 0.0
        %742 = vmatprep.subr.mxu0 0.0
        %743 = vmatpush1.msra.mxu0 0.0
        %744 = vmatprep.subr.mxu0 0.0
        %745 = vmatpush1.msra.mxu0 0.0
        %746 = vmatprep.subr.mxu0 0.0
        %747 = vmatpush1.msra.mxu0 0.0
        %748 = vmatprep.subr.mxu0 0.0
        %749 = vmatpush1.msra.mxu0 0.0
        %750 = vmatprep.subr.mxu0 0.0
        %751 = vmatpush1.msra.mxu0 0.0
        %752 = vmatprep.subr.mxu0 0.0
        %753 = vmatpush1.msra.mxu0 0.0
        %754 = vmatprep.subr.mxu0 0.0
        %755 = vmatpush1.msra.mxu0 0.0
        %756 = vmatprep.subr.mxu0 0.0
        %757 = vmatpush1.msra.mxu0 0.0
        %758 = vmatprep.subr.mxu0 0.0
        %759 = vmatpush1.msra.mxu0 0.0
        %760 = vmatprep.mubr.f32.mxu0 0.0
        %761 = vmatmul.mubr.f32.gmra.mrb[0].mxu0 %v691
        %v762 = vpop.f32.mrb[0].mxu0
        %v763 = vadd.f32 %v688, %v762
        %v764 = vpop.f32.mrb[0].mxu0
        %765 = vmatprep.mubr.f32.mxu0 0.0
        %766 = vmatmul.mubr.f32.gmra.mrb[0].mxu0 %v694
        %v767 = vpop.f32.mrb[0].mxu0
        %v768 = vadd.f32 %v688, %v767
        %v769 = vpop.f32.mrb[0].mxu0
        %770 = vdwg.mxu0
        %v771 = vmul.f32 %v763, %v763
        %v772 = vmul.f32 %v768, %v768
        %v773 = vsel %vm432, %v771, 0.0
        %774 = vadd.xlane.f32.xlu0 %v773
        %v775 = vpop.xlane.xlu0 %774
        %v776 = vsel %vm432, %v772, 0.0
        %777 = vadd.xlane.f32.xlu0 %v776
        %v778 = vpop.xlane.xlu0 %777
        %v779 = vmax.f32 %v775, 1e-12
        %v780 = vmax.f32 %v778, 1e-12
        %v781 = vrsqrt.pop %v779
        %v782 = vrsqrt.pop %v780
        %v783 = vmul.f32 %v763, %v781
        %v784 = vmul.f32 %v768, %v782
        %v785 = vmax.f32 %v783, 0.0
        %v786 = vmax.f32 %v784, 0.0
        %v787 = vld [vmem:[%s2 + $0xb0] sm:$0xff]
        %v788 = vld [vmem:[%s2 + $0xb8] sm:$0xff]
        %v789 = vld [vmem:[%s2 + $0xc0] sm:$0xff]
        %v790 = vld [vmem:[%s2 + $0xc8] sm:$0xff]
        %v791 = vld [vmem:[%s2 + $0xd0] sm:$0x1]
        %v792 = vlaneseq
        %v793 = vshrl.u32 %v792, 7
        %v794 = vsub.s32 0, %v793
        %v795 = vrot.slane %v791, %v794
        %v797 = vsel %vm432, %v785, 0
        %v800 = vsel %vm432, %v786, 0
        %802 = vmatprep.subr.mxu0 0.0
        %803 = vmatpush1.msra.mxu0 %v787
        %804 = vmatprep.subr.mxu0 0.0
        %805 = vmatpush1.msra.mxu0 %v788
        %806 = vmatprep.subr.mxu0 0.0
        %807 = vmatpush1.msra.mxu0 %v789
        %808 = vmatprep.subr.mxu0 0.0
        %809 = vmatpush1.msra.mxu0 %v790
        %810 = vmatprep.subr.mxu0 0.0
        %811 = vmatpush1.msra.mxu0 0.0
        %812 = vmatprep.subr.mxu0 0.0
        %813 = vmatpush1.msra.mxu0 0.0
        %814 = vmatprep.subr.mxu0 0.0
        %815 = vmatpush1.msra.mxu0 0.0
        %816 = vmatprep.subr.mxu0 0.0
        %817 = vmatpush1.msra.mxu0 0.0
        %818 = vmatprep.subr.mxu0 0.0
        %819 = vmatpush1.msra.mxu0 0.0
        %820 = vmatprep.subr.mxu0 0.0
        %821 = vmatpush1.msra.mxu0 0.0
        %822 = vmatprep.subr.mxu0 0.0
        %823 = vmatpush1.msra.mxu0 0.0
        %824 = vmatprep.subr.mxu0 0.0
        %825 = vmatpush1.msra.mxu0 0.0
        %826 = vmatprep.subr.mxu0 0.0
        %827 = vmatpush1.msra.mxu0 0.0
        %828 = vmatprep.subr.mxu0 0.0
        %829 = vmatpush1.msra.mxu0 0.0
        %830 = vmatprep.subr.mxu0 0.0
        %831 = vmatpush1.msra.mxu0 0.0
        %832 = vmatprep.subr.mxu0 0.0
        %833 = vmatpush1.msra.mxu0 0.0
        %834 = vmatprep.subr.mxu0 0.0
        %835 = vmatpush1.msra.mxu0 0.0
        %836 = vmatprep.subr.mxu0 0.0
        %837 = vmatpush1.msra.mxu0 0.0
        %838 = vmatprep.subr.mxu0 0.0
        %839 = vmatpush1.msra.mxu0 0.0
        %840 = vmatprep.subr.mxu0 0.0
        %841 = vmatpush1.msra.mxu0 0.0
        %842 = vmatprep.subr.mxu0 0.0
        %843 = vmatpush1.msra.mxu0 0.0
        %844 = vmatprep.subr.mxu0 0.0
        %845 = vmatpush1.msra.mxu0 0.0
        %846 = vmatprep.subr.mxu0 0.0
        %847 = vmatpush1.msra.mxu0 0.0
        %848 = vmatprep.subr.mxu0 0.0
        %849 = vmatpush1.msra.mxu0 0.0
        %850 = vmatprep.subr.mxu0 0.0
        %851 = vmatpush1.msra.mxu0 0.0
        %852 = vmatprep.subr.mxu0 0.0
        %853 = vmatpush1.msra.mxu0 0.0
        %854 = vmatprep.subr.mxu0 0.0
        %855 = vmatpush1.msra.mxu0 0.0
        %856 = vmatprep.subr.mxu0 0.0
        %857 = vmatpush1.msra.mxu0 0.0
        %858 = vmatprep.subr.mxu0 0.0
        %859 = vmatpush1.msra.mxu0 0.0
        %860 = vmatprep.subr.mxu0 0.0
        %861 = vmatpush1.msra.mxu0 0.0
        %862 = vmatprep.subr.mxu0 0.0
        %863 = vmatpush1.msra.mxu0 0.0
        %864 = vmatprep.subr.mxu0 0.0
        %865 = vmatpush1.msra.mxu0 0.0
        %866 = vmatprep.mubr.f32.mxu0 0.0
        %867 = vmatmul.mubr.f32.gmra.mrb[0].mxu0 %v797
        %v868 = vpop.f32.mrb[0].mxu0
        %v869 = vadd.f32 %v795, %v868
        %v870 = vpop.f32.mrb[0].mxu0
        %871 = vmatprep.mubr.f32.mxu0 0.0
        %872 = vmatmul.mubr.f32.gmra.mrb[0].mxu0 %v800
        %v873 = vpop.f32.mrb[0].mxu0
        %v874 = vadd.f32 %v795, %v873
        %v875 = vpop.f32.mrb[0].mxu0
        %876 = vdwg.mxu0
        %v877 = vmax.f32 %v869, 0.0
        %v878 = vmax.f32 %v874, 0.0
        %v879 = vpack.c.bf16 %v878, %v877
        %880 = vmatprep.subr.bf16.mxu0 0
        %881 = vmatpush1.bf16.msra.mxu0 %v879
        %882 = vmatprep.subr.bf16.mxu0 0
        %883 = vmatpush1.bf16.msra.mxu0 0
        %884 = vmatprep.subr.bf16.mxu0 0
        %885 = vmatpush1.bf16.msra.mxu0 0
        %886 = vmatprep.subr.bf16.mxu0 0
        %887 = vmatpush1.bf16.msra.mxu0 0
        %888 = vmatprep.subr.bf16.mxu0 0
        %889 = vmatpush1.bf16.msra.mxu0 0
        %890 = vmatprep.subr.bf16.mxu0 0
        %891 = vmatpush1.bf16.msra.mxu0 0
        %892 = vmatprep.subr.bf16.mxu0 0
        %893 = vmatpush1.bf16.msra.mxu0 0
        %894 = vmatprep.subr.bf16.mxu0 0
        %895 = vmatpush1.bf16.msra.mxu0 0
        %896 = vmatprep.subr.bf16.mxu0 0
        %897 = vmatpush1.bf16.msra.mxu0 0
        %898 = vmatprep.subr.bf16.mxu0 0
        %899 = vmatpush1.bf16.msra.mxu0 0
        %900 = vmatprep.subr.bf16.mxu0 0
        %901 = vmatpush1.bf16.msra.mxu0 0
        %902 = vmatprep.subr.bf16.mxu0 0
        %903 = vmatpush1.bf16.msra.mxu0 0
        %904 = vmatprep.subr.bf16.mxu0 0
        %905 = vmatpush1.bf16.msra.mxu0 0
        %906 = vmatprep.subr.bf16.mxu0 0
        %907 = vmatpush1.bf16.msra.mxu0 0
        %908 = vmatprep.subr.bf16.mxu0 0
        %909 = vmatpush1.bf16.msra.mxu0 0
        %910 = vmatprep.subr.bf16.mxu0 0
        %911 = vmatpush1.bf16.msra.mxu0 0
        %912 = vmatprep.mubr.bf16.mxu0 0
        %913 = vmatmul.mubr.bf16.gmra.mrb[0].mxu0 %v368
        %v914 = vpop.f32.mrb[0].mxu0
        %v915 = vadd.f32 0.0, %v914
        %v916 = vpop.f32.mrb[0].mxu0
        %v917 = vpop.f32.mrb[0].mxu0
        %v918 = vadd.f32 0.0, %v917
        %v919 = vpop.f32.mrb[0].mxu0
        %920 = vdwg.mxu0
        %v921 = vmul.f32 %v915, %v267
        %v922 = vmul.f32 %v918, %v268
        %925 = vrot.lane.b32.xlu0 %v921, 32
        %v926 = vpop.permute.xlu0 %925
        %927 = vrot.lane.b32.xlu0 %v922, 32
        %v928 = vpop.permute.xlu0 %927
        %v931 = vsel %vm432, %v785, %v926
        %v932 = vsel %vm432, %v786, %v928
        %v933 = vld [vmem:[%s2 + $0xd8] sm:$0xff]
        %v934 = vld [vmem:[%s2 + $0xe0] sm:$0xff]
        %v935 = vld [vmem:[%s2 + $0xe8] sm:$0xff]
        %v936 = vld [vmem:[%s2 + $0xf0] sm:$0xff]
        %v937 = vld [vmem:[%s2 + $0xf8] sm:$0xff]
        %v938 = vld [vmem:[%s2 + $0x100] sm:$0xff]
        %v939 = vld [vmem:[%s2 + $0x108] sm:$0xff]
        %v940 = vld [vmem:[%s2 + $0x110] sm:$0xff]
        %v941 = vld [vmem:[%s2 + $0x118] sm:$0x1]
        %v942 = vlaneseq
        %v943 = vshrl.u32 %v942, 7
        %v944 = vsub.s32 0, %v943
        %v945 = vrot.slane %v941, %v944
        %v947 = vsel %vm689, %v931, 0
        %v950 = vsel %vm689, %v932, 0
        %952 = vmatprep.subr.mxu0 0.0
        %953 = vmatpush1.msra.mxu0 %v933
        %954 = vmatprep.subr.mxu0 0.0
        %955 = vmatpush1.msra.mxu0 %v934
        %956 = vmatprep.subr.mxu0 0.0
        %957 = vmatpush1.msra.mxu0 %v935
        %958 = vmatprep.subr.mxu0 0.0
        %959 = vmatpush1.msra.mxu0 %v936
        %960 = vmatprep.subr.mxu0 0.0
        %961 = vmatpush1.msra.mxu0 %v937
        %962 = vmatprep.subr.mxu0 0.0
        %963 = vmatpush1.msra.mxu0 %v938
        %964 = vmatprep.subr.mxu0 0.0
        %965 = vmatpush1.msra.mxu0 %v939
        %966 = vmatprep.subr.mxu0 0.0
        %967 = vmatpush1.msra.mxu0 %v940
        %968 = vmatprep.subr.mxu0 0.0
        %969 = vmatpush1.msra.mxu0 0.0
        %970 = vmatprep.subr.mxu0 0.0
        %971 = vmatpush1.msra.mxu0 0.0
        %972 = vmatprep.subr.mxu0 0.0
        %973 = vmatpush1.msra.mxu0 0.0
        %974 = vmatprep.subr.mxu0 0.0
        %975 = vmatpush1.msra.mxu0 0.0
        %976 = vmatprep.subr.mxu0 0.0
        %977 = vmatpush1.msra.mxu0 0.0
        %978 = vmatprep.subr.mxu0 0.0
        %979 = vmatpush1.msra.mxu0 0.0
        %980 = vmatprep.subr.mxu0 0.0
        %981 = vmatpush1.msra.mxu0 0.0
        %982 = vmatprep.subr.mxu0 0.0
        %983 = vmatpush1.msra.mxu0 0.0
        %984 = vmatprep.subr.mxu0 0.0
        %985 = vmatpush1.msra.mxu0 0.0
        %986 = vmatprep.subr.mxu0 0.0
        %987 = vmatpush1.msra.mxu0 0.0
        %988 = vmatprep.subr.mxu0 0.0
        %989 = vmatpush1.msra.mxu0 0.0
        %990 = vmatprep.subr.mxu0 0.0
        %991 = vmatpush1.msra.mxu0 0.0
        %992 = vmatprep.subr.mxu0 0.0
        %993 = vmatpush1.msra.mxu0 0.0
        %994 = vmatprep.subr.mxu0 0.0
        %995 = vmatpush1.msra.mxu0 0.0
        %996 = vmatprep.subr.mxu0 0.0
        %997 = vmatpush1.msra.mxu0 0.0
        %998 = vmatprep.subr.mxu0 0.0
        %999 = vmatpush1.msra.mxu0 0.0
        %1000 = vmatprep.subr.mxu0 0.0
        %1001 = vmatpush1.msra.mxu0 0.0
        %1002 = vmatprep.subr.mxu0 0.0
        %1003 = vmatpush1.msra.mxu0 0.0
        %1004 = vmatprep.subr.mxu0 0.0
        %1005 = vmatpush1.msra.mxu0 0.0
        %1006 = vmatprep.subr.mxu0 0.0
        %1007 = vmatpush1.msra.mxu0 0.0
        %1008 = vmatprep.subr.mxu0 0.0
        %1009 = vmatpush1.msra.mxu0 0.0
        %1010 = vmatprep.subr.mxu0 0.0
        %1011 = vmatpush1.msra.mxu0 0.0
        %1012 = vmatprep.subr.mxu0 0.0
        %1013 = vmatpush1.msra.mxu0 0.0
        %1014 = vmatprep.subr.mxu0 0.0
        %1015 = vmatpush1.msra.mxu0 0.0
        %1016 = vmatprep.mubr.f32.mxu0 0.0
        %1017 = vmatmul.mubr.f32.gmra.mrb[0].mxu0 %v947
        %v1018 = vpop.f32.mrb[0].mxu0
        %v1019 = vadd.f32 %v945, %v1018
        %v1020 = vpop.f32.mrb[0].mxu0
        %1021 = vmatprep.mubr.f32.mxu0 0.0
        %1022 = vmatmul.mubr.f32.gmra.mrb[0].mxu0 %v950
        %v1023 = vpop.f32.mrb[0].mxu0
        %v1024 = vadd.f32 %v945, %v1023
        %v1025 = vpop.f32.mrb[0].mxu0
        %1026 = vdwg.mxu0
        %v1027 = vmul.f32 %v1019, %v1019
        %v1028 = vmul.f32 %v1024, %v1024
        %v1029 = vsel %vm432, %v1027, 0.0
        %1030 = vadd.xlane.f32.xlu0 %v1029
        %v1031 = vpop.xlane.xlu0 %1030
        %v1032 = vsel %vm432, %v1028, 0.0
        %1033 = vadd.xlane.f32.xlu0 %v1032
        %v1034 = vpop.xlane.xlu0 %1033
        %v1035 = vmax.f32 %v1031, 1e-12
        %v1036 = vmax.f32 %v1034, 1e-12
        %v1037 = vrsqrt.pop %v1035
        %v1038 = vrsqrt.pop %v1036
        %v1039 = vmul.f32 %v1019, %v1037
        %v1040 = vmul.f32 %v1024, %v1038
        %v1041 = vld [vmem:[%s2 + $0x120] sm:$0xff]
        %v1042 = vld [vmem:[%s2 + $0x128] sm:$0xff]
        %v1043 = vld [vmem:[%s2 + $0x130] sm:$0xff]
        %v1044 = vld [vmem:[%s2 + $0x138] sm:$0xff]
        %v1045 = vld [vmem:[%s2 + $0x140] sm:$0x1]
        %v1046 = vlaneseq
        %v1047 = vshrl.u32 %v1046, 7
        %v1048 = vsub.s32 0, %v1047
        %v1049 = vrot.slane %v1045, %v1048
        %v1051 = vsel %vm432, %v1039, 0
        %v1054 = vsel %vm432, %v1040, 0
        %1056 = vmatprep.subr.mxu0 0.0
        %1057 = vmatpush1.msra.mxu0 %v1041
        %1058 = vmatprep.subr.mxu0 0.0
        %1059 = vmatpush1.msra.mxu0 %v1042
        %1060 = vmatprep.subr.mxu0 0.0
        %1061 = vmatpush1.msra.mxu0 %v1043
        %1062 = vmatprep.subr.mxu0 0.0
        %1063 = vmatpush1.msra.mxu0 %v1044
        %1064 = vmatprep.subr.mxu0 0.0
        %1065 = vmatpush1.msra.mxu0 0.0
        %1066 = vmatprep.subr.mxu0 0.0
        %1067 = vmatpush1.msra.mxu0 0.0
        %1068 = vmatprep.subr.mxu0 0.0
        %1069 = vmatpush1.msra.mxu0 0.0
        %1070 = vmatprep.subr.mxu0 0.0
        %1071 = vmatpush1.msra.mxu0 0.0
        %1072 = vmatprep.subr.mxu0 0.0
        %1073 = vmatpush1.msra.mxu0 0.0
        %1074 = vmatprep.subr.mxu0 0.0
        %1075 = vmatpush1.msra.mxu0 0.0
        %1076 = vmatprep.subr.mxu0 0.0
        %1077 = vmatpush1.msra.mxu0 0.0
        %1078 = vmatprep.subr.mxu0 0.0
        %1079 = vmatpush1.msra.mxu0 0.0
        %1080 = vmatprep.subr.mxu0 0.0
        %1081 = vmatpush1.msra.mxu0 0.0
        %1082 = vmatprep.subr.mxu0 0.0
        %1083 = vmatpush1.msra.mxu0 0.0
        %1084 = vmatprep.subr.mxu0 0.0
        %1085 = vmatpush1.msra.mxu0 0.0
        %1086 = vmatprep.subr.mxu0 0.0
        %1087 = vmatpush1.msra.mxu0 0.0
        %1088 = vmatprep.subr.mxu0 0.0
        %1089 = vmatpush1.msra.mxu0 0.0
        %1090 = vmatprep.subr.mxu0 0.0
        %1091 = vmatpush1.msra.mxu0 0.0
        %1092 = vmatprep.subr.mxu0 0.0
        %1093 = vmatpush1.msra.mxu0 0.0
        %1094 = vmatprep.subr.mxu0 0.0
        %1095 = vmatpush1.msra.mxu0 0.0
        %1096 = vmatprep.subr.mxu0 0.0
        %1097 = vmatpush1.msra.mxu0 0.0
        %1098 = vmatprep.subr.mxu0 0.0
        %1099 = vmatpush1.msra.mxu0 0.0
        %1100 = vmatprep.subr.mxu0 0.0
        %1101 = vmatpush1.msra.mxu0 0.0
        %1102 = vmatprep.subr.mxu0 0.0
        %1103 = vmatpush1.msra.mxu0 0.0
        %1104 = vmatprep.subr.mxu0 0.0
        %1105 = vmatpush1.msra.mxu0 0.0
        %1106 = vmatprep.subr.mxu0 0.0
        %1107 = vmatpush1.msra.mxu0 0.0
        %1108 = vmatprep.subr.mxu0 0.0
        %1109 = vmatpush1.msra.mxu0 0.0
        %1110 = vmatprep.subr.mxu0 0.0
        %1111 = vmatpush1.msra.mxu0 0.0
        %1112 = vmatprep.subr.mxu0 0.0
        %1113 = vmatpush1.msra.mxu0 0.0
        %1114 = vmatprep.subr.mxu0 0.0
        %1115 = vmatpush1.msra.mxu0 0.0
        %1116 = vmatprep.subr.mxu0 0.0
        %1117 = vmatpush1.msra.mxu0 0.0
        %1118 = vmatprep.subr.mxu0 0.0
        %1119 = vmatpush1.msra.mxu0 0.0
        %1120 = vmatprep.mubr.f32.mxu0 0.0
        %1121 = vmatmul.mubr.f32.gmra.mrb[0].mxu0 %v1051
        %v1122 = vpop.f32.mrb[0].mxu0
        %v1123 = vadd.f32 %v1049, %v1122
        %v1124 = vpop.f32.mrb[0].mxu0
        %1125 = vmatprep.mubr.f32.mxu0 0.0
        %1126 = vmatmul.mubr.f32.gmra.mrb[0].mxu0 %v1054
        %v1127 = vpop.f32.mrb[0].mxu0
        %v1128 = vadd.f32 %v1049, %v1127
        %v1129 = vpop.f32.mrb[0].mxu0
        %1130 = vdwg.mxu0
        %v1131 = vmax.f32 %v1123, 0.0
        %v1132 = vmax.f32 %v1128, 0.0
        %v1133 = vpack.c.bf16 %v1132, %v1131
        %1134 = vmatprep.subr.bf16.mxu0 0
        %1135 = vmatpush1.bf16.msra.mxu0 %v1133
        %1136 = vmatprep.subr.bf16.mxu0 0
        %1137 = vmatpush1.bf16.msra.mxu0 0
        %1138 = vmatprep.subr.bf16.mxu0 0
        %1139 = vmatpush1.bf16.msra.mxu0 0
        %1140 = vmatprep.subr.bf16.mxu0 0
        %1141 = vmatpush1.bf16.msra.mxu0 0
        %1142 = vmatprep.subr.bf16.mxu0 0
        %1143 = vmatpush1.bf16.msra.mxu0 0
        %1144 = vmatprep.subr.bf16.mxu0 0
        %1145 = vmatpush1.bf16.msra.mxu0 0
        %1146 = vmatprep.subr.bf16.mxu0 0
        %1147 = vmatpush1.bf16.msra.mxu0 0
        %1148 = vmatprep.subr.bf16.mxu0 0
        %1149 = vmatpush1.bf16.msra.mxu0 0
        %1150 = vmatprep.subr.bf16.mxu0 0
        %1151 = vmatpush1.bf16.msra.mxu0 0
        %1152 = vmatprep.subr.bf16.mxu0 0
        %1153 = vmatpush1.bf16.msra.mxu0 0
        %1154 = vmatprep.subr.bf16.mxu0 0
        %1155 = vmatpush1.bf16.msra.mxu0 0
        %1156 = vmatprep.subr.bf16.mxu0 0
        %1157 = vmatpush1.bf16.msra.mxu0 0
        %1158 = vmatprep.subr.bf16.mxu0 0
        %1159 = vmatpush1.bf16.msra.mxu0 0
        %1160 = vmatprep.subr.bf16.mxu0 0
        %1161 = vmatpush1.bf16.msra.mxu0 0
        %1162 = vmatprep.subr.bf16.mxu0 0
        %1163 = vmatpush1.bf16.msra.mxu0 0
        %1164 = vmatprep.subr.bf16.mxu0 0
        %1165 = vmatpush1.bf16.msra.mxu0 0
        %1166 = vmatprep.mubr.bf16.mxu0 0
        %1167 = vmatmul.mubr.bf16.gmra.mrb[0].mxu0 %v368
        %v1168 = vpop.f32.mrb[0].mxu0
        %v1169 = vadd.f32 0.0, %v1168
        %v1170 = vpop.f32.mrb[0].mxu0
        %v1171 = vpop.f32.mrb[0].mxu0
        %v1172 = vadd.f32 0.0, %v1171
        %v1173 = vpop.f32.mrb[0].mxu0
        %1174 = vdwg.mxu0
        %v1175 = vmul.f32 %v1169, %v267
        %v1176 = vmul.f32 %v1172, %v268
        %1179 = vrot.lane.b32.xlu0 %v1175, 32
        %v1180 = vpop.permute.xlu0 %1179
        %1181 = vrot.lane.b32.xlu0 %v1176, 32
        %v1182 = vpop.permute.xlu0 %1181
        %v1185 = vsel %vm432, %v1039, %v1180
        %v1186 = vsel %vm432, %v1040, %v1182
        %v1187 = vld [vmem:[%s2 + $0x148] sm:$0xff]
        %v1188 = vld [vmem:[%s2 + $0x150] sm:$0xff]
        %v1189 = vld [vmem:[%s2 + $0x158] sm:$0xff]
        %v1190 = vld [vmem:[%s2 + $0x160] sm:$0xff]
        %v1191 = vld [vmem:[%s2 + $0x168] sm:$0xff]
        %v1192 = vld [vmem:[%s2 + $0x170] sm:$0xff]
        %v1193 = vld [vmem:[%s2 + $0x178] sm:$0xff]
        %v1194 = vld [vmem:[%s2 + $0x180] sm:$0xff]
        %v1195 = vld [vmem:[%s2 + $0x188] sm:$0xff]
        %v1196 = vld [vmem:[%s2 + $0x190] sm:$0xff]
        %v1197 = vld [vmem:[%s2 + $0x198] sm:$0xff]
        %v1198 = vld [vmem:[%s2 + $0x1a0] sm:$0xff]
        %v1199 = vld [vmem:[%s2 + $0x1a8] sm:$0x1]
        %v1200 = vlaneseq
        %v1201 = vshrl.u32 %v1200, 7
        %v1202 = vsub.s32 0, %v1201
        %v1203 = vrot.slane %v1199, %v1202
        %vm1204 = vcmask 785408
        %v1206 = vsel %vm1204, %v1185, 0
        %v1209 = vsel %vm1204, %v1186, 0
        %1211 = vmatprep.subr.mxu0 0.0
        %1212 = vmatpush1.msra.mxu0 %v1187
        %1213 = vmatprep.subr.mxu0 0.0
        %1214 = vmatpush1.msra.mxu0 %v1188
        %1215 = vmatprep.subr.mxu0 0.0
        %1216 = vmatpush1.msra.mxu0 %v1189
        %1217 = vmatprep.subr.mxu0 0.0
        %1218 = vmatpush1.msra.mxu0 %v1190
        %1219 = vmatprep.subr.mxu0 0.0
        %1220 = vmatpush1.msra.mxu0 %v1191
        %1221 = vmatprep.subr.mxu0 0.0
        %1222 = vmatpush1.msra.mxu0 %v1192
        %1223 = vmatprep.subr.mxu0 0.0
        %1224 = vmatpush1.msra.mxu0 %v1193
        %1225 = vmatprep.subr.mxu0 0.0
        %1226 = vmatpush1.msra.mxu0 %v1194
        %1227 = vmatprep.subr.mxu0 0.0
        %1228 = vmatpush1.msra.mxu0 %v1195
        %1229 = vmatprep.subr.mxu0 0.0
        %1230 = vmatpush1.msra.mxu0 %v1196
        %1231 = vmatprep.subr.mxu0 0.0
        %1232 = vmatpush1.msra.mxu0 %v1197
        %1233 = vmatprep.subr.mxu0 0.0
        %1234 = vmatpush1.msra.mxu0 %v1198
        %1235 = vmatprep.subr.mxu0 0.0
        %1236 = vmatpush1.msra.mxu0 0.0
        %1237 = vmatprep.subr.mxu0 0.0
        %1238 = vmatpush1.msra.mxu0 0.0
        %1239 = vmatprep.subr.mxu0 0.0
        %1240 = vmatpush1.msra.mxu0 0.0
        %1241 = vmatprep.subr.mxu0 0.0
        %1242 = vmatpush1.msra.mxu0 0.0
        %1243 = vmatprep.subr.mxu0 0.0
        %1244 = vmatpush1.msra.mxu0 0.0
        %1245 = vmatprep.subr.mxu0 0.0
        %1246 = vmatpush1.msra.mxu0 0.0
        %1247 = vmatprep.subr.mxu0 0.0
        %1248 = vmatpush1.msra.mxu0 0.0
        %1249 = vmatprep.subr.mxu0 0.0
        %1250 = vmatpush1.msra.mxu0 0.0
        %1251 = vmatprep.subr.mxu0 0.0
        %1252 = vmatpush1.msra.mxu0 0.0
        %1253 = vmatprep.subr.mxu0 0.0
        %1254 = vmatpush1.msra.mxu0 0.0
        %1255 = vmatprep.subr.mxu0 0.0
        %1256 = vmatpush1.msra.mxu0 0.0
        %1257 = vmatprep.subr.mxu0 0.0
        %1258 = vmatpush1.msra.mxu0 0.0
        %1259 = vmatprep.subr.mxu0 0.0
        %1260 = vmatpush1.msra.mxu0 0.0
        %1261 = vmatprep.subr.mxu0 0.0
        %1262 = vmatpush1.msra.mxu0 0.0
        %1263 = vmatprep.subr.mxu0 0.0
        %1264 = vmatpush1.msra.mxu0 0.0
        %1265 = vmatprep.subr.mxu0 0.0
        %1266 = vmatpush1.msra.mxu0 0.0
        %1267 = vmatprep.subr.mxu0 0.0
        %1268 = vmatpush1.msra.mxu0 0.0
        %1269 = vmatprep.subr.mxu0 0.0
        %1270 = vmatpush1.msra.mxu0 0.0
        %1271 = vmatprep.subr.mxu0 0.0
        %1272 = vmatpush1.msra.mxu0 0.0
        %1273 = vmatprep.subr.mxu0 0.0
        %1274 = vmatpush1.msra.mxu0 0.0
        %1275 = vmatprep.mubr.f32.mxu0 0.0
        %1276 = vmatmul.mubr.f32.gmra.mrb[0].mxu0 %v1206
        %v1277 = vpop.f32.mrb[0].mxu0
        %v1278 = vadd.f32 %v1203, %v1277
        %v1279 = vpop.f32.mrb[0].mxu0
        %1280 = vmatprep.mubr.f32.mxu0 0.0
        %1281 = vmatmul.mubr.f32.gmra.mrb[0].mxu0 %v1209
        %v1282 = vpop.f32.mrb[0].mxu0
        %v1283 = vadd.f32 %v1203, %v1282
        %v1284 = vpop.f32.mrb[0].mxu0
        %1285 = vdwg.mxu0
        %v1286 = vmul.f32 %v1278, %v1278
        %v1287 = vmul.f32 %v1283, %v1283
        %v1288 = vsel %vm432, %v1286, 0.0
        %1289 = vadd.xlane.f32.xlu0 %v1288
        %v1290 = vpop.xlane.xlu0 %1289
        %v1291 = vsel %vm432, %v1287, 0.0
        %1292 = vadd.xlane.f32.xlu0 %v1291
        %v1293 = vpop.xlane.xlu0 %1292
        %v1294 = vmax.f32 %v1290, 1e-12
        %v1295 = vmax.f32 %v1293, 1e-12
        %v1296 = vrsqrt.pop %v1294
        %v1297 = vrsqrt.pop %v1295
        %v1298 = vmul.f32 %v1278, %v1296
        %v1299 = vmul.f32 %v1283, %v1297
        %v1300 = vmax.f32 %v1298, 0.0
        %v1301 = vmax.f32 %v1299, 0.0
        %1304 = vrot.lane.b32.xlu0 %v1286, 96
        %v1305 = vpop.permute.xlu0 %1304
        %1306 = vrot.lane.b32.xlu0 %v1287, 96
        %v1307 = vpop.permute.xlu0 %1306
        %vm1310 = vcmask 64512
        %v1311 = vsel %vm1310, %v1305, 0.0
        %1312 = vadd.xlane.f32.xlu0 %v1311
        %v1313 = vpop.xlane.xlu0 %1312
        %v1314 = vsel %vm1310, %v1307, 0.0
        %1315 = vadd.xlane.f32.xlu0 %v1314
        %v1316 = vpop.xlane.xlu0 %1315
        %v1317 = vmax.f32 %v1313, 1e-12
        %v1318 = vmax.f32 %v1316, 1e-12
        %v1319 = vrsqrt.pop %v1317
        %v1320 = vrsqrt.pop %v1318
        %v1321 = vmul.f32 %v1278, %v1319
        %v1322 = vmul.f32 %v1283, %v1320
        %v1323 = vmax.f32 %v1321, 0.0
        %v1324 = vmax.f32 %v1322, 0.0
        %vm1325 = vcmask 326912
        %v1326 = vsel %vm1325, %v1323, -inf
        %1327 = vmax.xlane.f32.xlu0 %v1326
        %v1328 = vpop.xlane.xlu0 %1327
        %v1329 = vsel %vm1325, %v1324, -inf
        %1330 = vmax.xlane.f32.xlu0 %v1329
        %v1331 = vpop.xlane.xlu0 %1330
        %v1332 = vsub.f32 %v1323, %v1328
        %v1333 = vsub.f32 %v1324, %v1331
        %v1334 = vmul.f32 %v1332, 1.442695
        %v1335 = vpow.pop %v1334
        %v1336 = vmul.f32 %v1333, 1.442695
        %v1337 = vpow.pop %v1336
        %1340 = vrot.lane.b32.xlu0 %v1335, 96
        %v1341 = vpop.permute.xlu0 %1340
        %1342 = vrot.lane.b32.xlu0 %v1337, 96
        %v1343 = vpop.permute.xlu0 %1342
        %v1346 = vsel %vm1310, %v1341, 0.0
        %1347 = vadd.xlane.f32.xlu0 %v1346
        %v1348 = vpop.xlane.xlu0 %1347
        %v1349 = vsel %vm1310, %v1343, 0.0
        %1350 = vadd.xlane.f32.xlu0 %v1349
        %v1351 = vpop.xlane.xlu0 %1350
        %v1352 = vrcp.pop %v1348
        %v1353 = vrcp.pop %v1351
        %v1354 = vmul.f32 %v1335, %v1352
        %v1355 = vmul.f32 %v1337, %v1353
        %1358 = vrot.lane.b32.xlu0 %v1354, 96
        %v1359 = vpop.permute.xlu0 %1358
        %1360 = vrot.lane.b32.xlu0 %v1355, 96
        %v1361 = vpop.permute.xlu0 %1360
        %1364 = vxpose.xlu0.b32.start [1/16] %v1359, 128
        %1365 = vxpose.xlu0.b32.cont [2/16] %v1361, 128
        %1366 = vxpose.xlu0.b32.cont [3/16] 0.0, 128
        %1367 = vxpose.xlu0.b32.cont [4/16] 0.0, 128
        %1368 = vxpose.xlu0.b32.cont [5/16] 0.0, 128
        %1369 = vxpose.xlu0.b32.cont [6/16] 0.0, 128
        %1370 = vxpose.xlu0.b32.cont [7/16] 0.0, 128
        %1371 = vxpose.xlu0.b32.cont [8/16] 0.0, 128
        %1372 = vxpose.xlu0.b32.cont [9/16] 0.0, 128
        %1373 = vxpose.xlu0.b32.cont [10/16] 0.0, 128
        %1374 = vxpose.xlu0.b32.cont [11/16] 0.0, 128
        %1375 = vxpose.xlu0.b32.cont [12/16] 0.0, 128
        %1376 = vxpose.xlu0.b32.cont [13/16] 0.0, 128
        %1377 = vxpose.xlu0.b32.cont [14/16] 0.0, 128
        %1378 = vxpose.xlu0.b32.cont [15/16] 0.0, 128
        %1379 = vxpose.xlu0.b32.end [16/16] 0.0, 128
        %v1380 = vpop.trf.xlu0
        %v1381 = vpop.trf.xlu0
        %v1382 = vpop.trf.xlu0
        %v1383 = vpop.trf.xlu0
        %v1384 = vpop.trf.xlu0
        %v1385 = vpop.trf.xlu0
        %v1386 = vpop.trf.xlu0
        %v1387 = vpop.trf.xlu0
        %v1388 = vpop.trf.xlu0
        %v1389 = vpop.trf.xlu0
        %v1390 = vpop.trf.xlu0
        %v1391 = vpop.trf.xlu0
        %v1392 = vpop.trf.xlu0
        %v1393 = vpop.trf.xlu0
        %v1394 = vpop.trf.xlu0
        %v1395 = vpop.trf.xlu0
        %v1397 = vsel %vm258, %v1380, 0
        %1399 = vmatprep.subr.mxu0 0.0
        %1400 = vmatpush1.msra.mxu0 %v1300
        %1401 = vmatprep.subr.mxu0 0.0
        %1402 = vmatpush1.msra.mxu0 %v1301
        %1403 = vmatprep.subr.mxu0 0.0
        %1404 = vmatpush1.msra.mxu0 0.0
        %1405 = vmatprep.subr.mxu0 0.0
        %1406 = vmatpush1.msra.mxu0 0.0
        %1407 = vmatprep.subr.mxu0 0.0
        %1408 = vmatpush1.msra.mxu0 0.0
        %1409 = vmatprep.subr.mxu0 0.0
        %1410 = vmatpush1.msra.mxu0 0.0
        %1411 = vmatprep.subr.mxu0 0.0
        %1412 = vmatpush1.msra.mxu0 0.0
        %1413 = vmatprep.subr.mxu0 0.0
        %1414 = vmatpush1.msra.mxu0 0.0
        %1415 = vmatprep.subr.mxu0 0.0
        %1416 = vmatpush1.msra.mxu0 0.0
        %1417 = vmatprep.subr.mxu0 0.0
        %1418 = vmatpush1.msra.mxu0 0.0
        %1419 = vmatprep.subr.mxu0 0.0
        %1420 = vmatpush1.msra.mxu0 0.0
        %1421 = vmatprep.subr.mxu0 0.0
        %1422 = vmatpush1.msra.mxu0 0.0
        %1423 = vmatprep.subr.mxu0 0.0
        %1424 = vmatpush1.msra.mxu0 0.0
        %1425 = vmatprep.subr.mxu0 0.0
        %1426 = vmatpush1.msra.mxu0 0.0
        %1427 = vmatprep.subr.mxu0 0.0
        %1428 = vmatpush1.msra.mxu0 0.0
        %1429 = vmatprep.subr.mxu0 0.0
        %1430 = vmatpush1.msra.mxu0 0.0
        %1431 = vmatprep.subr.mxu0 0.0
        %1432 = vmatpush1.msra.mxu0 0.0
        %1433 = vmatprep.subr.mxu0 0.0
        %1434 = vmatpush1.msra.mxu0 0.0
        %1435 = vmatprep.subr.mxu0 0.0
        %1436 = vmatpush1.msra.mxu0 0.0
        %1437 = vmatprep.subr.mxu0 0.0
        %1438 = vmatpush1.msra.mxu0 0.0
        %1439 = vmatprep.subr.mxu0 0.0
        %1440 = vmatpush1.msra.mxu0 0.0
        %1441 = vmatprep.subr.mxu0 0.0
        %1442 = vmatpush1.msra.mxu0 0.0
        %1443 = vmatprep.subr.mxu0 0.0
        %1444 = vmatpush1.msra.mxu0 0.0
        %1445 = vmatprep.subr.mxu0 0.0
        %1446 = vmatpush1.msra.mxu0 0.0
        %1447 = vmatprep.subr.mxu0 0.0
        %1448 = vmatpush1.msra.mxu0 0.0
        %1449 = vmatprep.subr.mxu0 0.0
        %1450 = vmatpush1.msra.mxu0 0.0
        %1451 = vmatprep.subr.mxu0 0.0
        %1452 = vmatpush1.msra.mxu0 0.0
        %1453 = vmatprep.subr.mxu0 0.0
        %1454 = vmatpush1.msra.mxu0 0.0
        %1455 = vmatprep.subr.mxu0 0.0
        %1456 = vmatpush1.msra.mxu0 0.0
        %1457 = vmatprep.subr.mxu0 0.0
        %1458 = vmatpush1.msra.mxu0 0.0
        %1459 = vmatprep.subr.mxu0 0.0
        %1460 = vmatpush1.msra.mxu0 0.0
        %1461 = vmatprep.subr.mxu0 0.0
        %1462 = vmatpush1.msra.mxu0 0.0
        %1463 = vmatprep.mubr.f32.mxu0 0.0
        %1464 = vmatmul.mubr.f32.gmra.mrb[0].mxu0 %v1397
        %v1465 = vpop.f32.mrb[0].mxu0
        %v1466 = vadd.f32 0.0, %v1465
        %v1467 = vpop.f32.mrb[0].mxu0
        %1468 = vdwg.mxu0
        %v1470 = vrot.slane %v1466, 1
        %1471 = vrot.lane.b32.xlu0 %v1470, 32
        %v1472 = vpop.permute.xlu0 %1471
        %v1474 = vrot.slane %v1466, 2
        %1475 = vrot.lane.b32.xlu0 %v1474, 64
        %v1476 = vpop.permute.xlu0 %1475
        %v1478 = vrot.slane %v1466, 3
        %1479 = vrot.lane.b32.xlu0 %v1478, 96
        %v1480 = vpop.permute.xlu0 %1479
        %v1482 = vrot.slane %v1466, 4
        %v1484 = vrot.slane %v1466, 5
        %1485 = vrot.lane.b32.xlu0 %v1484, 32
        %v1486 = vpop.permute.xlu0 %1485
        %v1488 = vrot.slane %v1466, 6
        %1489 = vrot.lane.b32.xlu0 %v1488, 64
        %v1490 = vpop.permute.xlu0 %1489
        %v1492 = vrot.slane %v1466, 7
        %1493 = vrot.lane.b32.xlu0 %v1492, 96
        %v1494 = vpop.permute.xlu0 %1493
        %v1496 = vsel %vm432, %v1466, %v1472
        %v1497 = vsel %vm689, %v1496, %v1476
        %v1498 = vsel %vm1204, %v1497, %v1480
        %v1499 = vsel %vm432, %v1482, %v1486
        %v1500 = vsel %vm689, %v1499, %v1490
        %v1501 = vsel %vm1204, %v1500, %v1494
        %v1504 = vcombine.low %v1498, %v1501
        %v1506 = vunpack.c.l.s4 1966171168
        %v1507 = vunpack.c.0.s8 %v1506
        %v1508 = vlaneseq
        %v1509 = vshrl.u32 %v1508, 7
        %v1510 = vsub.s32 %v1507, %v1509
        %v1511 = vrot.slane %v1504, %v1510
        %v1513 = vunpack.c.l.s4 1966171168
        %v1514 = vunpack.c.0.s8 %v1513
        %v1515 = vlaneseq
        %v1516 = vshrl.u32 %v1515, 7
        %v1517 = vsub.s32 %v1514, %v1516
        %v1518 = vrot.slane %v1511, %v1517
        %v1520 = vlaneseq
        %vm1521 = vcmp.ge.s32.totalorder %v1520, 0
        %vm1522 = vcmp.lt.s32.totalorder %v1520, 256
        %vm1523 = vmand %vm1521, %vm1522
        %1524 = vst.msk [vmem:[%s252] sm:$0x3] %vm1523, %v1518
        %v1525 = vld [vmem:[%s3] sm:$0xff]
        %v1526 = vld [vmem:[%s3 + $0x8] sm:$0xff]
        %v1527 = vld [vmem:[%s3 + $0x10] sm:$0xff]
        %v1528 = vld [vmem:[%s3 + $0x18] sm:$0xff]
        %v1529 = vld [vmem:[%s3 + $0x20] sm:$0xff]
        %v1530 = vld [vmem:[%s3 + $0x28] sm:$0xff]
        %v1531 = vld [vmem:[%s3 + $0x30] sm:$0xff]
        %v1532 = vld [vmem:[%s3 + $0x38] sm:$0xff]
        %v1533 = vld [vmem:[%s3 + $0x40] sm:$0xff]
        %v1534 = vld [vmem:[%s3 + $0x48] sm:$0xff]
        %v1535 = vld [vmem:[%s3 + $0x50] sm:$0xff]
        %v1536 = vld [vmem:[%s3 + $0x58] sm:$0xff]
        %v1537 = vld [vmem:[%s3 + $0x60] sm:$0xff]
        %v1538 = vld [vmem:[%s3 + $0x68] sm:$0xff]
        %v1539 = vld [vmem:[%s3 + $0x70] sm:$0xff]
        %v1540 = vld [vmem:[%s3 + $0x78] sm:$0xff]
        %v1541 = vld [vmem:[%s3 + $0x80] sm:$0xff]
        %v1542 = vld [vmem:[%s3 + $0x88] sm:$0xff]
        %v1543 = vld [vmem:[%s3 + $0x90] sm:$0xff]
        %v1544 = vld [vmem:[%s3 + $0x98] sm:$0xff]
        %v1545 = vld [vmem:[%s3 + $0xa0] sm:$0xff]
        %v1546 = vld [vmem:[%s3 + $0xa8] sm:$0xff]
        %v1547 = vld [vmem:[%s3 + $0xb0] sm:$0xff]
        %v1548 = vld [vmem:[%s3 + $0xb8] sm:$0xff]
        %v1549 = vld [vmem:[%s3 + $0xc0] sm:$0xff]
        %v1550 = vld [vmem:[%s3 + $0xc8] sm:$0xff]
        %v1551 = vld [vmem:[%s3 + $0xd0] sm:$0xff]
        %v1552 = vld [vmem:[%s3 + $0xd8] sm:$0xff]
        %v1553 = vld [vmem:[%s3 + $0xe0] sm:$0xff]
        %v1554 = vld [vmem:[%s3 + $0xe8] sm:$0xff]
        %v1555 = vld [vmem:[%s3 + $0xf0] sm:$0xff]
        %v1556 = vld [vmem:[%s3 + $0xf8] sm:$0xff]
        %v1557 = vld [vmem:[%s3 + $0x100] sm:$0x1]
        %1558 = vmatprep.subr.mxu0 0.0
        %1559 = vmatpush1.msra.mxu0 %v1525
        %1560 = vmatprep.subr.mxu0 0.0
        %1561 = vmatpush1.msra.mxu0 %v1526
        %1562 = vmatprep.subr.mxu0 0.0
        %1563 = vmatpush1.msra.mxu0 %v1527
        %1564 = vmatprep.subr.mxu0 0.0
        %1565 = vmatpush1.msra.mxu0 %v1528
        %1566 = vmatprep.subr.mxu0 0.0
        %1567 = vmatpush1.msra.mxu0 %v1529
        %1568 = vmatprep.subr.mxu0 0.0
        %1569 = vmatpush1.msra.mxu0 %v1530
        %1570 = vmatprep.subr.mxu0 0.0
        %1571 = vmatpush1.msra.mxu0 %v1531
        %1572 = vmatprep.subr.mxu0 0.0
        %1573 = vmatpush1.msra.mxu0 %v1532
        %1574 = vmatprep.subr.mxu0 0.0
        %1575 = vmatpush1.msra.mxu0 %v1533
        %1576 = vmatprep.subr.mxu0 0.0
        %1577 = vmatpush1.msra.mxu0 %v1534
        %1578 = vmatprep.subr.mxu0 0.0
        %1579 = vmatpush1.msra.mxu0 %v1535
        %1580 = vmatprep.subr.mxu0 0.0
        %1581 = vmatpush1.msra.mxu0 %v1536
        %1582 = vmatprep.subr.mxu0 0.0
        %1583 = vmatpush1.msra.mxu0 %v1537
        %1584 = vmatprep.subr.mxu0 0.0
        %1585 = vmatpush1.msra.mxu0 %v1538
        %1586 = vmatprep.subr.mxu0 0.0
        %1587 = vmatpush1.msra.mxu0 %v1539
        %1588 = vmatprep.subr.mxu0 0.0
        %1589 = vmatpush1.msra.mxu0 %v1540
        %1590 = vmatprep.subr.mxu0 0.0
        %1591 = vmatpush1.msra.mxu0 %v1541
        %1592 = vmatprep.subr.mxu0 0.0
        %1593 = vmatpush1.msra.mxu0 %v1542
        %1594 = vmatprep.subr.mxu0 0.0
        %1595 = vmatpush1.msra.mxu0 %v1543
        %1596 = vmatprep.subr.mxu0 0.0
        %1597 = vmatpush1.msra.mxu0 %v1544
        %1598 = vmatprep.subr.mxu0 0.0
        %1599 = vmatpush1.msra.mxu0 %v1545
        %1600 = vmatprep.subr.mxu0 0.0
        %1601 = vmatpush1.msra.mxu0 %v1546
        %1602 = vmatprep.subr.mxu0 0.0
        %1603 = vmatpush1.msra.mxu0 %v1547
        %1604 = vmatprep.subr.mxu0 0.0
        %1605 = vmatpush1.msra.mxu0 %v1548
        %1606 = vmatprep.subr.mxu0 0.0
        %1607 = vmatpush1.msra.mxu0 %v1549
        %1608 = vmatprep.subr.mxu0 0.0
        %1609 = vmatpush1.msra.mxu0 %v1550
        %1610 = vmatprep.subr.mxu0 0.0
        %1611 = vmatpush1.msra.mxu0 %v1551
        %1612 = vmatprep.subr.mxu0 0.0
        %1613 = vmatpush1.msra.mxu0 %v1552
        %1614 = vmatprep.subr.mxu0 0.0
        %1615 = vmatpush1.msra.mxu0 %v1553
        %1616 = vmatprep.subr.mxu0 0.0
        %1617 = vmatpush1.msra.mxu0 %v1554
        %1618 = vmatprep.subr.mxu0 0.0
        %1619 = vmatpush1.msra.mxu0 %v1555
        %1620 = vmatprep.subr.mxu0 0.0
        %1621 = vmatpush1.msra.mxu0 %v1556
        %1622 = vmatprep.mubr.f32.mxu0 %v1501
        %1623 = vmatmul.mubr.f32.gmra.mrb[0].mxu0 %v1498
        %v1624 = vpop.f32.mrb[0].mxu0
        %v1625 = vadd.f32 %v1557, %v1624
        %v1626 = vpop.f32.mrb[0].mxu0
        %1627 = vdwg.mxu0
        %vm1628 = vcmask 73728
        %1629 = vst.msk [vmem:[%s238] sm:$0x1] %vm1628, %v1625
        %p1630 = scmp.lt.s32.totalorder %s20, 1
        %s1631 = scalar_select %p1630, %s20, 1
        %s1632 = smul.addr %s1631, 2
        %s1633 = scalar_lea.vmem %s4, %s1632
        %s1634 = sand.u32 %s148, 1
        %s1635 = scalar_lea.sflag [#allocation3], %s1634
        %s1636 = sand.u32 %s148, 1
        %s1637 = scalar_lea.vmem [#allocation2], %s1636
        // Predicated region
        $region37: #{diffpool_forward.1} parent=35 // pred_check
          %p1638 = pneg %p132
        $region38: #{diffpool_forward.1} parent=35 // pred_check_branch
          %1640 = sbr.rel (%p1638) target = $region40
        $region39: #{diffpool_forward.1} parent=35 // pred_region
          _
        $region40: #{diffpool_forward.1} parent=35 // pred_fallthru
          _
        // Predicated region
        $region41: #{diffpool_forward.1} parent=35 // pred_check
          %p1641 = pneg %p158
        $region42: #{diffpool_forward.1} parent=35 // pred_check_branch
          %1643 = sbr.rel (%p1641) target = $region44
        $region43: #{diffpool_forward.1} parent=35 // pred_region
          %s1645 = ssub.s32 16, 16
          %1646 = vsyncadd %s1635, %s1645
          %s1647 = smul.addr %s20, 16
          %s1648 = scalar_lea.hbm %s5, %s1647
          %s1650 = sshll.u32 %s1637, 4
          %s1651 = int_to_ptr.vmem [resolvable:$true] %s1650
          %1653 = dma.vmem_to_hbm [thread:$0]  %s1651, 16, %s1648, %s1635
        $region44: #{diffpool_forward.1} parent=35 // pred_fallthru
          _
      $region36: #{diffpool_forward.1} parent=5 // pred_fallthru
        _
      %p1654 = scmp.le.s32.totalorder 2, %s15
      // Predicated region
      $region45: #{diffpool_forward.1} parent=5 // pred_check
        %p1655 = pneg %p1654
      $region46: #{diffpool_forward.1} parent=5 // pred_check_branch
        %1657 = sbr.rel (%p1655) target = $region48
      $region47: #{diffpool_forward.1} parent=5 // pred_region
        %s1658 = ssub.s32 %s15, 2
        // Predicated region
        $region49: #{diffpool_forward.1} parent=47 // pred_check
          %p1659 = pneg %p138
        $region50: #{diffpool_forward.1} parent=47 // pred_check_branch
          %1661 = sbr.rel (%p1659) target = $region52
        $region51: #{diffpool_forward.1} parent=47 // pred_region
          %p1662 = scmp.lt.s32.totalorder %s21, 1
          %s1663 = scalar_select %p1662, %s21, 1
          %s1664 = smul.addr %s1663, 2
          %s1665 = scalar_lea.vmem %s4, %s1664
        $region52: #{diffpool_forward.1} parent=47 // pred_fallthru
          _
        // Predicated region
        $region53: #{diffpool_forward.1} parent=47 // pred_check
          %p1666 = pneg %p164
        $region54: #{diffpool_forward.1} parent=47 // pred_check_branch
          %1668 = sbr.rel (%p1666) target = $region56
        $region55: #{diffpool_forward.1} parent=47 // pred_region
          %s1669 = sand.u32 %s149, 1
          %s1670 = scalar_lea.sflag [#allocation3], %s1669
          %s1671 = sand.u32 %s149, 1
          %s1672 = scalar_lea.vmem [#allocation2], %s1671
          %1673 = dma.done %s1670, 16
        $region56: #{diffpool_forward.1} parent=47 // pred_fallthru
          _
      $region48: #{diffpool_forward.1} parent=5 // pred_fallthru
        _
    $region6: #{diffpool_forward.1} parent=1 // loop_footer
      %s19 = sadd.s32 1, %s15
    $region7: #{diffpool_forward.1} parent=1 // loop_footer_branch
      %14 = sbr.rel target = $region3
    $region8: #{diffpool_forward.1} parent=1 // loop_exit
      _
    %1674 = vsyncpa [#allocation3], 1
    %s1675 = scalar_lea.sflag [#allocation3], 1
    %1676 = vsyncpa %s1675, 1

</llo_original>
